<compile_context>
chip_gen: v5e
topology: v5e:2x2
jax: 0.10.0
libtpu: 0.0.40
codegen_flags: <defaults>
</compile_context>

<pallas_src>
import math

import jax
import jax.numpy as jnp
from jax import lax
from jax.experimental import pallas as pl
from jax.experimental.pallas import tpu as pltpu


def _choose_s_tile(S, D, itemsize):
    """Largest 128-multiple S tile (capped at 1024) that divides S and keeps the
    double-buffered x block within a ~4 MiB per-buffer budget; whole sequence for
    small S."""
    if S <= 1024:
        return S
    budget = 4 * 1024 * 1024
    fitting = [ts for ts in (1024, 512, 256, 128)
               if S % ts == 0 and ts * D * itemsize <= budget]
    if fitting:
        return fitting[0]
    divisors = [ts for ts in (128, 256, 512, 1024) if S % ts == 0]
    if divisors:
        return divisors[0]  # smallest divisor bounds VMEM when D is very large
    # TODO(synk): S not a multiple of 128 -> fall back to a single full-S tile
    # instead of masking a ragged tail.
    return S


def _vmem_limit_bytes(est):
    """Scoped-VMEM request with generation-aware headroom (v7x: 64 MiB physical)."""
    try:
        phys = pltpu.get_tpu_info().vmem_capacity_bytes
    except Exception:
        phys = 64 * 1024 * 1024  # conservative (v7x-sized) fallback
    cap = max(32 * 1024 * 1024, (phys * 3) // 4)
    return int(min(cap, max(32 * 1024 * 1024, 2 * est)))


def _constq_att_body(x_ref, qk_ref, wv_ref, mask_ref, o_ref,
                     m_sc, l_sc, acc_sc, *, mask_3d, compute_dtype):
    s_idx = pl.program_id(1)

    @pl.when(s_idx == 0)
    def _init():
        m_sc[...] = jnp.full_like(m_sc, -jnp.inf)
        l_sc[...] = jnp.zeros_like(l_sc)
        acc_sc[...] = jnp.zeros_like(acc_sc)

    x = x_ref[0]                                  # (TS, D), model dtype
    if x.dtype != compute_dtype:
        x = x.astype(compute_dtype)               # in-kernel cast (v5e bf16 path)

    qk = qk_ref[...]                              # (T, D), pre-scaled by 1/sqrt(H)

    # scores = qk @ x^T, contracting the minor D dim of both operands (T, TS).
    # TODO(synk): verify with pl.lower_as_mlir that this transposed-RHS contraction
    # does not materialize an XLU transpose of the big x tile.
    scores = lax.dot_general(qk, x, (((1,), (1,)), ((), ())),
                             preferred_element_type=jnp.float32)

    if mask_ref is not None:
        m = mask_ref[0] if mask_3d else mask_ref[...]
        scores = scores + m.astype(jnp.float32)

    # Online softmax update across S tiles (all math in fp32).
    m_prev = m_sc[...]                                               # (T, 1)
    m_new = jnp.maximum(m_prev, jnp.max(scores, axis=-1, keepdims=True))
    m_safe = jnp.where(m_new == -jnp.inf, 0.0, m_new)                # fully-masked guard
    alpha = jnp.exp(m_prev - m_safe)                                 # (T, 1)
    p = jnp.exp(scores - m_safe)                                     # (T, TS)
    l_sc[...] = alpha * l_sc[...] + jnp.sum(p, axis=-1, keepdims=True)
    m_sc[...] = m_new

    # acc += p @ x  (fp32 accumulation into a small (T, D) buffer).
    acc_sc[...] = alpha * acc_sc[...] + jnp.dot(
        p.astype(compute_dtype), x, preferred_element_type=jnp.float32)

    @pl.when(s_idx == pl.num_programs(1) - 1)
    def _finalize():
        # Normalize, then apply the V projection once per batch element.
        attn_x = (acc_sc[...] * pl.reciprocal(l_sc[...], approx=False)
                  ).astype(compute_dtype)                            # (T, D)
        o_ref[0] = jnp.dot(attn_x, wv_ref[...],
                           preferred_element_type=jnp.float32).astype(o_ref.dtype)


def constq_att(x, wk, wv, q, mask=None, *, s_tile=None, compute_dtype=None):
    """Pallas ConstQAtt forward.

    x:    (B, S, D)
    wk:   (D, H)   (transposed nn.Linear weight)
    wv:   (D, H)
    q:    (T, H)
    mask: None, (T, S) or (B, T, S) -- added to the pre-softmax scores.
    compute_dtype: optional MXU operand dtype (e.g. jnp.bfloat16 on v5e).
    returns (B, T, H)
    """
    B, S, D = x.shape
    T, H = q.shape
    assert wk.shape == (D, H) and wv.shape == (D, H)

    cdt = jnp.dtype(compute_dtype) if compute_dtype is not None else x.dtype

    # Normalize mask layout without materializing a (B, T, S) broadcast in HBM.
    mask_3d = False
    if mask is not None:
        if mask.ndim == 3 and mask.shape[0] == 1:
            mask = mask[0]
        if mask.ndim == 2:
            assert mask.shape == (T, S), mask.shape
        else:
            assert mask.shape == (B, T, S), mask.shape
            mask_3d = True

    # Reassociation: fold wk and the 1/sqrt(H) scale into a tiny (T, D) constant.
    qk = jnp.einsum("th,dh->td", q.astype(jnp.float32), wk.astype(jnp.float32))
    qk = (qk * (1.0 / math.sqrt(H))).astype(cdt)
    wv_c = wv.astype(cdt)

    if s_tile is None:
        ts = _choose_s_tile(S, D, x.dtype.itemsize)
    else:
        assert S % s_tile == 0 and (s_tile == S or s_tile % 128 == 0), s_tile
        ts = s_tile
    n_s = S // ts

    # TODO(synk): on v7x (2 TensorCores) with B == 1 or odd, add a second "parallel"
    # axis splitting S per core with a tiny flash-merge epilogue.

    def build(single_buffer):
        def cspec(shape, imap):
            # Constant operands fetched once -> single-buffer to reclaim VMEM.
            if single_buffer:
                return pl.BlockSpec(shape, imap, pipeline_mode=pl.Buffered(1))
            return pl.BlockSpec(shape, imap)

        in_specs = [
            pl.BlockSpec((1, ts, D), lambda b, s: (b, s, 0)),   # x tile (streamed)
            cspec((T, D), lambda b, s: (0, 0)),                 # qk (constant)
            cspec((D, H), lambda b, s: (0, 0)),                 # wv (constant)
        ]
        if mask is not None:
            if mask_3d:
                in_specs.append(pl.BlockSpec((1, T, ts), lambda b, s: (b, 0, s)))
            elif n_s == 1:
                in_specs.append(cspec((T, ts), lambda b, s: (0, s)))
            else:
                in_specs.append(pl.BlockSpec((T, ts), lambda b, s: (0, s)))

        if mask is not None:
            def kernel(x_ref, qk_ref, wv_ref, mask_ref, o_ref, m_sc, l_sc, acc_sc):
                _constq_att_body(x_ref, qk_ref, wv_ref, mask_ref, o_ref,
                                 m_sc, l_sc, acc_sc,
                                 mask_3d=mask_3d, compute_dtype=cdt)
        else:
            def kernel(x_ref, qk_ref, wv_ref, o_ref, m_sc, l_sc, acc_sc):
                _constq_att_body(x_ref, qk_ref, wv_ref, None, o_ref,
                                 m_sc, l_sc, acc_sc,
                                 mask_3d=False, compute_dtype=cdt)

        # Rough VMEM footprint (pipelined inputs/output + scratch).
        cbuf = 1 if single_buffer else 2
        est = (2 * ts * D * x.dtype.itemsize          # x (double-buffered)
               + cbuf * T * D * cdt.itemsize          # qk
               + cbuf * D * H * cdt.itemsize          # wv
               + 2 * T * H * q.dtype.itemsize         # output block
               + (2 * T + T * D) * 4)                 # fp32 scratch (m, l, acc)
        if mask is not None:
            m_bytes = T * ts * mask.dtype.itemsize
            est += m_bytes if (not mask_3d and n_s == 1 and single_buffer) else 2 * m_bytes

        return pl.pallas_call(
            kernel,
            out_shape=jax.ShapeDtypeStruct((B, T, H), q.dtype),
            grid_spec=pltpu.PrefetchScalarGridSpec(
                num_scalar_prefetch=0,
                grid=(B, n_s),
                in_specs=in_specs,
                out_specs=pl.BlockSpec((1, T, H), lambda b, s: (b, 0, 0)),
                scratch_shapes=[
                    pltpu.VMEM((T, 1), jnp.float32),   # running max
                    pltpu.VMEM((T, 1), jnp.float32),   # running sum
                    pltpu.VMEM((T, D), jnp.float32),   # (T, D) output accumulator
                ],
            ),
            compiler_params=pltpu.CompilerParams(
                dimension_semantics=("parallel", "arbitrary"),
                vmem_limit_bytes=_vmem_limit_bytes(est)),
        )

    inputs = [x, qk, wv_c] + ([mask] if mask is not None else [])

    if hasattr(pl, "Buffered"):
        try:
            return build(True)(*inputs)
        except Exception:
            pass  # fall back to default double-buffered constant operands
    return build(False)(*inputs)


def constq_att_ref(x, wk, wv, q, mask=None):
    """Pure-JAX reference matching the PyTorch forward exactly."""
    H = q.shape[-1]
    xk = jnp.einsum("bsd,dh->bsh", x, wk)
    xv = jnp.einsum("bsd,dh->bsh", x, wv)
    scores = jnp.einsum("th,bsh->bts", q, xk) / math.sqrt(H)
    if mask is not None:
        scores = scores + mask
    scores = jax.nn.softmax(scores.astype(jnp.float32), axis=-1).astype(q.dtype)
    return jnp.einsum("bts,bsh->bth", scores, xv)


if __name__ == "__main__":
    # Small shapes consistent with the module: batch, seqlen, dim, hdim, num_tokens.
    B, S, D, H, T = 2, 8, 32, 32, 8

    key = jax.random.PRNGKey(0)
    kx, kk, kv, kq, km = jax.random.split(key, 5)

    x = jax.random.normal(kx, (B, S, D), dtype=jnp.float32)
    wk = jax.random.normal(kk, (D, H), dtype=jnp.float32) / math.sqrt(D)
    wv = jax.random.normal(kv, (D, H), dtype=jnp.float32) / math.sqrt(D)
    q = jax.random.normal(kq, (T, H), dtype=jnp.float32)        # N(0, 1) like torch.normal
    mask3 = jax.random.normal(km, (B, T, S), dtype=jnp.float32) * 0.1
    mask2 = mask3[0]

    def check(out, ref, atol=1e-4, rtol=1e-4):
        assert out.shape == ref.shape, (out.shape, ref.shape)
        err = float(jnp.max(jnp.abs(out - ref)))
        assert jnp.allclose(out, ref, atol=atol, rtol=rtol), err

    # Batched (B, T, S) mask.
    out = jax.block_until_ready(constq_att(x, wk, wv, q, mask3))
    check(out, constq_att_ref(x, wk, wv, q, mask3))

    # Shared (T, S) mask (no HBM broadcast to B copies).
    out2 = jax.block_until_ready(constq_att(x, wk, wv, q, mask2))
    check(out2, constq_att_ref(x, wk, wv, q, mask2))

    # mask=None path (specialized: no zero tensor DMA'd).
    out_nm = jax.block_until_ready(constq_att(x, wk, wv, q, None))
    check(out_nm, constq_att_ref(x, wk, wv, q, None))

    # Multi-tile path: exercises the flash-style online softmax across S tiles.
    B2, S2, D2, H2, T2 = 2, 256, 128, 64, 8
    k2 = jax.random.split(jax.random.PRNGKey(0), 5)
    x2 = jax.random.normal(k2[0], (B2, S2, D2), dtype=jnp.float32)
    wk2 = jax.random.normal(k2[1], (D2, H2), dtype=jnp.float32) / math.sqrt(D2)
    wv2 = jax.random.normal(k2[2], (D2, H2), dtype=jnp.float32) / math.sqrt(D2)
    q2 = jax.random.normal(k2[3], (T2, H2), dtype=jnp.float32)
    m2 = jax.random.normal(k2[4], (B2, T2, S2), dtype=jnp.float32) * 0.1
    out_t = jax.block_until_ready(constq_att(x2, wk2, wv2, q2, m2, s_tile=128))
    check(out_t, constq_att_ref(x2, wk2, wv2, q2, m2))

    # bf16 compute-dtype knob (v5e MXU path); fp32 softmax/accumulation retained.
    out_bf = jax.block_until_ready(
        constq_att(x2, wk2, wv2, q2, m2, s_tile=128, compute_dtype=jnp.bfloat16))
    check(out_bf, constq_att_ref(x2, wk2, wv2, q2, m2), atol=5e-2, rtol=5e-2)

    print("KERNEL_OK")
</pallas_src>

<mosaic_0001>
module attributes {stable_mosaic.version = 11 : i64} {
  func.func @kernel(%arg0: i32, %arg1: i32, %arg2: memref<1x8x32xf32, #tpu.memory_space<vmem>>, %arg3: memref<8x32xf32, #tpu.memory_space<vmem>>, %arg4: memref<32x32xf32, #tpu.memory_space<vmem>>, %arg5: memref<1x8x8xf32, #tpu.memory_space<vmem>>, %arg6: memref<1x8x32xf32, #tpu.memory_space<vmem>>, %arg7: memref<8x1xf32, #tpu.memory_space<vmem>>, %arg8: memref<8x1xf32, #tpu.memory_space<vmem>>, %arg9: memref<8x32xf32, #tpu.memory_space<vmem>>) attributes {dimension_semantics = [#tpu.dimension_semantics<parallel>, #tpu.dimension_semantics<arbitrary>], iteration_bounds = array<i64: 2, 1>, scalar_prefetch = 0 : i64, scratch_operands = 3 : i64, tpu.core_type = #tpu.core_type<tc>, window_params = [{transform_indices = @transform_0, window_bounds = array<i64: 1, 8, 32>}, {pipeline_mode = #tpu.pipeline_mode<synchronous>, transform_indices = @transform_1, window_bounds = array<i64: 8, 32>}, {pipeline_mode = #tpu.pipeline_mode<synchronous>, transform_indices = @transform_2, window_bounds = array<i64: 32, 32>}, {transform_indices = @transform_3, window_bounds = array<i64: 1, 8, 8>}, {transform_indices = @transform_4, window_bounds = array<i64: 1, 8, 32>}]} {
    %c0_i32 = arith.constant 0 : i32
    %0 = arith.cmpi eq, %arg1, %c0_i32 : i32
    %1 = arith.extui %0 : i1 to i32
    %c0_i32_0 = arith.constant 0 : i32
    %2 = arith.cmpi ne, %1, %c0_i32_0 : i32
    scf.if %2 {
      %cst_27 = arith.constant 0xFF800000 : f32
      %39 = vector.broadcast %cst_27 : f32 to vector<8x1xf32>
      %c0_28 = arith.constant 0 : index
      %c0_29 = arith.constant 0 : index
      %40 = vector.load %arg7[%c0_28, %c0_29] : memref<8x1xf32, #tpu.memory_space<vmem>>, vector<8x1xf32>
      tpu.vector_store %arg7[%c0_28, %c0_29], %39 {strides = array<i32>} : memref<8x1xf32, #tpu.memory_space<vmem>>, vector<8x1xf32>,
      %cst_30 = arith.constant 0.000000e+00 : f32
      %41 = vector.broadcast %cst_30 : f32 to vector<8x1xf32>
      %c0_31 = arith.constant 0 : index
      %c0_32 = arith.constant 0 : index
      %42 = vector.load %arg8[%c0_31, %c0_32] : memref<8x1xf32, #tpu.memory_space<vmem>>, vector<8x1xf32>
      tpu.vector_store %arg8[%c0_31, %c0_32], %41 {strides = array<i32>} : memref<8x1xf32, #tpu.memory_space<vmem>>, vector<8x1xf32>,
      %cst_33 = arith.constant 0.000000e+00 : f32
      %43 = vector.broadcast %cst_33 : f32 to vector<8x32xf32>
      %c0_34 = arith.constant 0 : index
      %c0_35 = arith.constant 0 : index
      %44 = vector.load %arg9[%c0_34, %c0_35] : memref<8x32xf32, #tpu.memory_space<vmem>>, vector<8x32xf32>
      tpu.vector_store %arg9[%c0_34, %c0_35], %43 {strides = array<i32>} : memref<8x32xf32, #tpu.memory_space<vmem>>, vector<8x32xf32>,
    } else {
    }
    %c0 = arith.constant 0 : index
    %c0_1 = arith.constant 0 : index
    %c0_2 = arith.constant 0 : index
    %3 = vector.load %arg2[%c0, %c0_1, %c0_2] : memref<1x8x32xf32, #tpu.memory_space<vmem>>, vector<1x8x32xf32>
    %4 = vector.shape_cast %3 : vector<1x8x32xf32> to vector<8x32xf32>
    %c0_3 = arith.constant 0 : index
    %c0_4 = arith.constant 0 : index
    %5 = vector.load %arg3[%c0_3, %c0_4] : memref<8x32xf32, #tpu.memory_space<vmem>>, vector<8x32xf32>
    %cst = arith.constant dense<0.000000e+00> : vector<8x8xf32>
    %6 = tpu.matmul %5, %4, %cst {dimension_numbers = #tpu.dot_dimension_numbers<[1], [1], [0], [0], [0, 0, 1, 0], [], []>} : vector<8x32xf32>, vector<8x32xf32>, vector<8x8xf32> -> vector<8x8xf32>
    %c0_5 = arith.constant 0 : index
    %c0_6 = arith.constant 0 : index
    %c0_7 = arith.constant 0 : index
    %7 = vector.load %arg5[%c0_5, %c0_6, %c0_7] : memref<1x8x8xf32, #tpu.memory_space<vmem>>, vector<1x8x8xf32>
    %8 = vector.shape_cast %7 : vector<1x8x8xf32> to vector<8x8xf32>
    %9 = arith.addf %6, %8 : vector<8x8xf32>
    %c0_8 = arith.constant 0 : index
    %c0_9 = arith.constant 0 : index
    %10 = vector.load %arg7[%c0_8, %c0_9] : memref<8x1xf32, #tpu.memory_space<vmem>>, vector<8x1xf32>
    %cst_10 = arith.constant dense<0xFF800000> : vector<8xf32>
    %11 = vector.multi_reduction <maximumf>, %9, %cst_10 [1] : vector<8x8xf32> to vector<8xf32>
    %12 = vector.shape_cast %11 : vector<8xf32> to vector<8x1xf32>
    %13 = arith.maximumf %10, %12 : vector<8x1xf32>
    %cst_11 = arith.constant 0xFF800000 : f32
    %14 = vector.broadcast %cst_11 : f32 to vector<8x1xf32>
    %15 = arith.cmpf oeq, %13, %14 : vector<8x1xf32>
    %cst_12 = arith.constant 0.000000e+00 : f32
    %16 = vector.broadcast %cst_12 : f32 to vector<8x1xf32>
    %17 = arith.select %15, %16, %13 : vector<8x1xi1>, vector<8x1xf32>
    %18 = arith.subf %10, %17 : vector<8x1xf32>
    %19 = math.exp %18 : vector<8x1xf32>
    %20 = vector.broadcast %17 : vector<8x1xf32> to vector<8x8xf32>
    %21 = arith.subf %9, %20 : vector<8x8xf32>
    %22 = math.exp %21 : vector<8x8xf32>
    %c0_13 = arith.constant 0 : index
    %c0_14 = arith.constant 0 : index
    %23 = vector.load %arg8[%c0_13, %c0_14] : memref<8x1xf32, #tpu.memory_space<vmem>>, vector<8x1xf32>
    %24 = arith.mulf %19, %23 : vector<8x1xf32>
    %cst_15 = arith.constant dense<0.000000e+00> : vector<8xf32>
    %25 = vector.multi_reduction <add>, %22, %cst_15 [1] : vector<8x8xf32> to vector<8xf32>
    %26 = vector.shape_cast %25 : vector<8xf32> to vector<8x1xf32>
    %27 = arith.addf %24, %26 : vector<8x1xf32>
    %c0_16 = arith.constant 0 : index
    %c0_17 = arith.constant 0 : index
    %28 = vector.load %arg8[%c0_16, %c0_17] : memref<8x1xf32, #tpu.memory_space<vmem>>, vector<8x1xf32>
    tpu.vector_store %arg8[%c0_16, %c0_17], %27 {strides = array<i32>} : memref<8x1xf32, #tpu.memory_space<vmem>>, vector<8x1xf32>,
    %c0_18 = arith.constant 0 : index
    %c0_19 = arith.constant 0 : index
    %29 = vector.load %arg7[%c0_18, %c0_19] : memref<8x1xf32, #tpu.memory_space<vmem>>, vector<8x1xf32>
    tpu.vector_store %arg7[%c0_18, %c0_19], %13 {strides = array<i32>} : memref<8x1xf32, #tpu.memory_space<vmem>>, vector<8x1xf32>,
    %c0_20 = arith.constant 0 : index
    %c0_21 = arith.constant 0 : index
    %30 = vector.load %arg9[%c0_20, %c0_21] : memref<8x32xf32, #tpu.memory_space<vmem>>, vector<8x32xf32>
    %31 = vector.broadcast %19 : vector<8x1xf32> to vector<8x32xf32>
    %32 = arith.mulf %31, %30 : vector<8x32xf32>
    %cst_22 = arith.constant dense<0.000000e+00> : vector<8x32xf32>
    %33 = tpu.matmul %22, %4, %cst_22 {dimension_numbers = #tpu.dot_dimension_numbers<[1], [0], [0], [1], [0, 0, 1, 1], [], []>} : vector<8x8xf32>, vector<8x32xf32>, vector<8x32xf32> -> vector<8x32xf32>
    %34 = arith.addf %32, %33 : vector<8x32xf32>
    %c0_23 = arith.constant 0 : index
    %c0_24 = arith.constant 0 : index
    %35 = vector.load %arg9[%c0_23, %c0_24] : memref<8x32xf32, #tpu.memory_space<vmem>>, vector<8x32xf32>
    tpu.vector_store %arg9[%c0_23, %c0_24], %34 {strides = array<i32>} : memref<8x32xf32, #tpu.memory_space<vmem>>, vector<8x32xf32>,
    %c0_i32_25 = arith.constant 0 : i32
    %36 = arith.cmpi eq, %arg1, %c0_i32_25 : i32
    %37 = arith.extui %36 : i1 to i32
    %c0_i32_26 = arith.constant 0 : i32
    %38 = arith.cmpi ne, %37, %c0_i32_26 : i32
    scf.if %38 {
      %c0_27 = arith.constant 0 : index
      %c0_28 = arith.constant 0 : index
      %39 = vector.load %arg9[%c0_27, %c0_28] : memref<8x32xf32, #tpu.memory_space<vmem>>, vector<8x32xf32>
      %c0_29 = arith.constant 0 : index
      %c0_30 = arith.constant 0 : index
      %40 = vector.load %arg8[%c0_29, %c0_30] : memref<8x1xf32, #tpu.memory_space<vmem>>, vector<8x1xf32>
      %41 = tpu.reciprocal %40 : vector<8x1xf32> -> vector<8x1xf32>
      %42 = vector.broadcast %41 : vector<8x1xf32> to vector<8x32xf32>
      %43 = arith.mulf %39, %42 : vector<8x32xf32>
      %c0_31 = arith.constant 0 : index
      %c0_32 = arith.constant 0 : index
      %44 = vector.load %arg4[%c0_31, %c0_32] : memref<32x32xf32, #tpu.memory_space<vmem>>, vector<32x32xf32>
      %cst_33 = arith.constant dense<0.000000e+00> : vector<8x32xf32>
      %45 = tpu.matmul %43, %44, %cst_33 {dimension_numbers = #tpu.dot_dimension_numbers<[1], [0], [0], [1], [0, 0, 1, 1], [], []>} : vector<8x32xf32>, vector<32x32xf32>, vector<8x32xf32> -> vector<8x32xf32>
      %c0_34 = arith.constant 0 : index
      %c0_35 = arith.constant 0 : index
      %c0_36 = arith.constant 0 : index
      %46 = vector.load %arg6[%c0_34, %c0_35, %c0_36] : memref<1x8x32xf32, #tpu.memory_space<vmem>>, vector<1x8x32xf32>
      %47 = vector.shape_cast %46 : vector<1x8x32xf32> to vector<8x32xf32>
      %48 = vector.shape_cast %45 : vector<8x32xf32> to vector<1x8x32xf32>
      tpu.vector_store %arg6[%c0_34, %c0_35, %c0_36], %48 {strides = array<i32>} : memref<1x8x32xf32, #tpu.memory_space<vmem>>, vector<1x8x32xf32>,
    } else {
    }
    return
  }
  func.func @transform_0(%arg0: i32, %arg1: i32) -> (i32, i32, i32) {
    %c0_i32 = arith.constant 0 : i32
    %c0_i32_0 = arith.constant 0 : i32
    return %arg0, %arg1, %c0_i32 : i32, i32, i32
  }
  func.func @transform_1(%arg0: i32, %arg1: i32) -> (i32, i32) {
    %c0_i32 = arith.constant 0 : i32
    %c0_i32_0 = arith.constant 0 : i32
    %c0_i32_1 = arith.constant 0 : i32
    return %c0_i32, %c0_i32_0 : i32, i32
  }
  func.func @transform_2(%arg0: i32, %arg1: i32) -> (i32, i32) {
    %c0_i32 = arith.constant 0 : i32
    %c0_i32_0 = arith.constant 0 : i32
    %c0_i32_1 = arith.constant 0 : i32
    return %c0_i32, %c0_i32_0 : i32, i32
  }
  func.func @transform_3(%arg0: i32, %arg1: i32) -> (i32, i32, i32) {
    %c0_i32 = arith.constant 0 : i32
    %c0_i32_0 = arith.constant 0 : i32
    return %arg0, %c0_i32, %arg1 : i32, i32, i32
  }
  func.func @transform_4(%arg0: i32, %arg1: i32) -> (i32, i32, i32) {
    %c0_i32 = arith.constant 0 : i32
    %c0_i32_0 = arith.constant 0 : i32
    %c0_i32_1 = arith.constant 0 : i32
    return %arg0, %c0_i32, %c0_i32_0 : i32, i32, i32
  }
}

module attributes {stable_mosaic.version = 11 : i64} {
  func.func @kernel(%arg0: i32, %arg1: i32, %arg2: memref<1x8x32xf32, #tpu.memory_space<vmem>>, %arg3: memref<8x32xf32, #tpu.memory_space<vmem>>, %arg4: memref<32x32xf32, #tpu.memory_space<vmem>>, %arg5: memref<1x8x8xf32, #tpu.memory_space<vmem>>, %arg6: memref<1x8x32xf32, #tpu.memory_space<vmem>>, %arg7: memref<8x1xf32, #tpu.memory_space<vmem>>, %arg8: memref<8x1xf32, #tpu.memory_space<vmem>>, %arg9: memref<8x32xf32, #tpu.memory_space<vmem>>) attributes {dimension_semantics = [#tpu.dimension_semantics<parallel>, #tpu.dimension_semantics<arbitrary>], iteration_bounds = array<i64: 2, 1>, scalar_prefetch = 0 : i64, scratch_operands = 3 : i64, tpu.core_type = #tpu.core_type<tc>, window_params = [{transform_indices = @transform_0, window_bounds = array<i64: 1, 8, 32>}, {pipeline_mode = #tpu.pipeline_mode<synchronous>, transform_indices = @transform_1, window_bounds = array<i64: 8, 32>}, {pipeline_mode = #tpu.pipeline_mode<synchronous>, transform_indices = @transform_2, window_bounds = array<i64: 32, 32>}, {transform_indices = @transform_3, window_bounds = array<i64: 1, 8, 8>}, {transform_indices = @transform_4, window_bounds = array<i64: 1, 8, 32>}]} {
    %c0_i32 = arith.constant 0 : i32
    %0 = arith.cmpi eq, %arg1, %c0_i32 : i32
    %1 = arith.extui %0 : i1 to i32
    %c0_i32_0 = arith.constant 0 : i32
    %2 = arith.cmpi ne, %1, %c0_i32_0 : i32
    scf.if %2 {
      %cst_27 = arith.constant 0xFF800000 : f32
      %39 = vector.broadcast %cst_27 : f32 to vector<8x1xf32>
      %c0_28 = arith.constant 0 : index
      %c0_29 = arith.constant 0 : index
      %40 = vector.load %arg7[%c0_28, %c0_29] : memref<8x1xf32, #tpu.memory_space<vmem>>, vector<8x1xf32>
      tpu.vector_store %arg7[%c0_28, %c0_29], %39 {strides = array<i32>} : memref<8x1xf32, #tpu.memory_space<vmem>>, vector<8x1xf32>,
      %cst_30 = arith.constant 0.000000e+00 : f32
      %41 = vector.broadcast %cst_30 : f32 to vector<8x1xf32>
      %c0_31 = arith.constant 0 : index
      %c0_32 = arith.constant 0 : index
      %42 = vector.load %arg8[%c0_31, %c0_32] : memref<8x1xf32, #tpu.memory_space<vmem>>, vector<8x1xf32>
      tpu.vector_store %arg8[%c0_31, %c0_32], %41 {strides = array<i32>} : memref<8x1xf32, #tpu.memory_space<vmem>>, vector<8x1xf32>,
      %cst_33 = arith.constant 0.000000e+00 : f32
      %43 = vector.broadcast %cst_33 : f32 to vector<8x32xf32>
      %c0_34 = arith.constant 0 : index
      %c0_35 = arith.constant 0 : index
      %44 = vector.load %arg9[%c0_34, %c0_35] : memref<8x32xf32, #tpu.memory_space<vmem>>, vector<8x32xf32>
      tpu.vector_store %arg9[%c0_34, %c0_35], %43 {strides = array<i32>} : memref<8x32xf32, #tpu.memory_space<vmem>>, vector<8x32xf32>,
    } else {
    }
    %c0 = arith.constant 0 : index
    %c0_1 = arith.constant 0 : index
    %c0_2 = arith.constant 0 : index
    %3 = vector.load %arg2[%c0, %c0_1, %c0_2] : memref<1x8x32xf32, #tpu.memory_space<vmem>>, vector<1x8x32xf32>
    %4 = vector.shape_cast %3 : vector<1x8x32xf32> to vector<8x32xf32>
    %c0_3 = arith.constant 0 : index
    %c0_4 = arith.constant 0 : index
    %5 = vector.load %arg3[%c0_3, %c0_4] : memref<8x32xf32, #tpu.memory_space<vmem>>, vector<8x32xf32>
    %cst = arith.constant dense<0.000000e+00> : vector<8x8xf32>
    %6 = tpu.matmul %5, %4, %cst {dimension_numbers = #tpu.dot_dimension_numbers<[1], [1], [0], [0], [0, 0, 1, 0], [], []>} : vector<8x32xf32>, vector<8x32xf32>, vector<8x8xf32> -> vector<8x8xf32>
    %c0_5 = arith.constant 0 : index
    %c0_6 = arith.constant 0 : index
    %c0_7 = arith.constant 0 : index
    %7 = vector.load %arg5[%c0_5, %c0_6, %c0_7] : memref<1x8x8xf32, #tpu.memory_space<vmem>>, vector<1x8x8xf32>
    %8 = vector.shape_cast %7 : vector<1x8x8xf32> to vector<8x8xf32>
    %9 = arith.addf %6, %8 : vector<8x8xf32>
    %c0_8 = arith.constant 0 : index
    %c0_9 = arith.constant 0 : index
    %10 = vector.load %arg7[%c0_8, %c0_9] : memref<8x1xf32, #tpu.memory_space<vmem>>, vector<8x1xf32>
    %cst_10 = arith.constant dense<0xFF800000> : vector<8xf32>
    %11 = vector.multi_reduction <maximumf>, %9, %cst_10 [1] : vector<8x8xf32> to vector<8xf32>
    %12 = vector.shape_cast %11 : vector<8xf32> to vector<8x1xf32>
    %13 = arith.maximumf %10, %12 : vector<8x1xf32>
    %cst_11 = arith.constant 0xFF800000 : f32
    %14 = vector.broadcast %cst_11 : f32 to vector<8x1xf32>
    %15 = arith.cmpf oeq, %13, %14 : vector<8x1xf32>
    %cst_12 = arith.constant 0.000000e+00 : f32
    %16 = vector.broadcast %cst_12 : f32 to vector<8x1xf32>
    %17 = arith.select %15, %16, %13 : vector<8x1xi1>, vector<8x1xf32>
    %18 = arith.subf %10, %17 : vector<8x1xf32>
    %19 = math.exp %18 : vector<8x1xf32>
    %20 = vector.broadcast %17 : vector<8x1xf32> to vector<8x8xf32>
    %21 = arith.subf %9, %20 : vector<8x8xf32>
    %22 = math.exp %21 : vector<8x8xf32>
    %c0_13 = arith.constant 0 : index
    %c0_14 = arith.constant 0 : index
    %23 = vector.load %arg8[%c0_13, %c0_14] : memref<8x1xf32, #tpu.memory_space<vmem>>, vector<8x1xf32>
    %24 = arith.mulf %19, %23 : vector<8x1xf32>
    %cst_15 = arith.constant dense<0.000000e+00> : vector<8xf32>
    %25 = vector.multi_reduction <add>, %22, %cst_15 [1] : vector<8x8xf32> to vector<8xf32>
    %26 = vector.shape_cast %25 : vector<8xf32> to vector<8x1xf32>
    %27 = arith.addf %24, %26 : vector<8x1xf32>
    %c0_16 = arith.constant 0 : index
    %c0_17 = arith.constant 0 : index
    %28 = vector.load %arg8[%c0_16, %c0_17] : memref<8x1xf32, #tpu.memory_space<vmem>>, vector<8x1xf32>
    tpu.vector_store %arg8[%c0_16, %c0_17], %27 {strides = array<i32>} : memref<8x1xf32, #tpu.memory_space<vmem>>, vector<8x1xf32>,
    %c0_18 = arith.constant 0 : index
    %c0_19 = arith.constant 0 : index
    %29 = vector.load %arg7[%c0_18, %c0_19] : memref<8x1xf32, #tpu.memory_space<vmem>>, vector<8x1xf32>
    tpu.vector_store %arg7[%c0_18, %c0_19], %13 {strides = array<i32>} : memref<8x1xf32, #tpu.memory_space<vmem>>, vector<8x1xf32>,
    %c0_20 = arith.constant 0 : index
    %c0_21 = arith.constant 0 : index
    %30 = vector.load %arg9[%c0_20, %c0_21] : memref<8x32xf32, #tpu.memory_space<vmem>>, vector<8x32xf32>
    %31 = vector.broadcast %19 : vector<8x1xf32> to vector<8x32xf32>
    %32 = arith.mulf %31, %30 : vector<8x32xf32>
    %cst_22 = arith.constant dense<0.000000e+00> : vector<8x32xf32>
    %33 = tpu.matmul %22, %4, %cst_22 {dimension_numbers = #tpu.dot_dimension_numbers<[1], [0], [0], [1], [0, 0, 1, 1], [], []>} : vector<8x8xf32>, vector<8x32xf32>, vector<8x32xf32> -> vector<8x32xf32>
    %34 = arith.addf %32, %33 : vector<8x32xf32>
    %c0_23 = arith.constant 0 : index
    %c0_24 = arith.constant 0 : index
    %35 = vector.load %arg9[%c0_23, %c0_24] : memref<8x32xf32, #tpu.memory_space<vmem>>, vector<8x32xf32>
    tpu.vector_store %arg9[%c0_23, %c0_24], %34 {strides = array<i32>} : memref<8x32xf32, #tpu.memory_space<vmem>>, vector<8x32xf32>,
    %c0_i32_25 = arith.constant 0 : i32
    %36 = arith.cmpi eq, %arg1, %c0_i32_25 : i32
    %37 = arith.extui %36 : i1 to i32
    %c0_i32_26 = arith.constant 0 : i32
    %38 = arith.cmpi ne, %37, %c0_i32_26 : i32
    scf.if %38 {
      %c0_27 = arith.constant 0 : index
      %c0_28 = arith.constant 0 : index
      %39 = vector.load %arg9[%c0_27, %c0_28] : memref<8x32xf32, #tpu.memory_space<vmem>>, vector<8x32xf32>
      %c0_29 = arith.constant 0 : index
      %c0_30 = arith.constant 0 : index
      %40 = vector.load %arg8[%c0_29, %c0_30] : memref<8x1xf32, #tpu.memory_space<vmem>>, vector<8x1xf32>
      %41 = tpu.reciprocal %40 : vector<8x1xf32> -> vector<8x1xf32>
      %42 = vector.broadcast %41 : vector<8x1xf32> to vector<8x32xf32>
      %43 = arith.mulf %39, %42 : vector<8x32xf32>
      %c0_31 = arith.constant 0 : index
      %c0_32 = arith.constant 0 : index
      %44 = vector.load %arg4[%c0_31, %c0_32] : memref<32x32xf32, #tpu.memory_space<vmem>>, vector<32x32xf32>
      %cst_33 = arith.constant dense<0.000000e+00> : vector<8x32xf32>
      %45 = tpu.matmul %43, %44, %cst_33 {dimension_numbers = #tpu.dot_dimension_numbers<[1], [0], [0], [1], [0, 0, 1, 1], [], []>} : vector<8x32xf32>, vector<32x32xf32>, vector<8x32xf32> -> vector<8x32xf32>
      %c0_34 = arith.constant 0 : index
      %c0_35 = arith.constant 0 : index
      %c0_36 = arith.constant 0 : index
      %46 = vector.load %arg6[%c0_34, %c0_35, %c0_36] : memref<1x8x32xf32, #tpu.memory_space<vmem>>, vector<1x8x32xf32>
      %47 = vector.shape_cast %46 : vector<1x8x32xf32> to vector<8x32xf32>
      %48 = vector.shape_cast %45 : vector<8x32xf32> to vector<1x8x32xf32>
      tpu.vector_store %arg6[%c0_34, %c0_35, %c0_36], %48 {strides = array<i32>} : memref<1x8x32xf32, #tpu.memory_space<vmem>>, vector<1x8x32xf32>,
    } else {
    }
    return
  }
  func.func @transform_0(%arg0: i32, %arg1: i32) -> (i32, i32, i32) {
    %c0_i32 = arith.constant 0 : i32
    %c0_i32_0 = arith.constant 0 : i32
    return %arg0, %arg1, %c0_i32 : i32, i32, i32
  }
  func.func @transform_1(%arg0: i32, %arg1: i32) -> (i32, i32) {
    %c0_i32 = arith.constant 0 : i32
    %c0_i32_0 = arith.constant 0 : i32
    %c0_i32_1 = arith.constant 0 : i32
    return %c0_i32, %c0_i32_0 : i32, i32
  }
  func.func @transform_2(%arg0: i32, %arg1: i32) -> (i32, i32) {
    %c0_i32 = arith.constant 0 : i32
    %c0_i32_0 = arith.constant 0 : i32
    %c0_i32_1 = arith.constant 0 : i32
    return %c0_i32, %c0_i32_0 : i32, i32
  }
  func.func @transform_3(%arg0: i32, %arg1: i32) -> (i32, i32, i32) {
    %c0_i32 = arith.constant 0 : i32
    %c0_i32_0 = arith.constant 0 : i32
    return %arg0, %c0_i32, %arg1 : i32, i32, i32
  }
  func.func @transform_4(%arg0: i32, %arg1: i32) -> (i32, i32, i32) {
    %c0_i32 = arith.constant 0 : i32
    %c0_i32_0 = arith.constant 0 : i32
    %c0_i32_1 = arith.constant 0 : i32
    return %arg0, %c0_i32, %c0_i32_0 : i32, i32, i32
  }
}

</mosaic_0001>

<llo_original>
// kernel: tpu_custom_call.1
$region0: #{tpu_custom_call.1}
  #allocation0 [shape = 'u32[]', space=smem, size = 0x4, offset = 0x4, fixed_abs, tag = 'smem constant byte address 0x4 - core index']
  #allocation1 [shape = 'u32[72,128]{1,0:T(1,128)}', space=vmem, size = 0x9000, scoped, tag = 'internal scratch']
  #allocation2 [shape = 'f32[8,1]{1,0:T(8,128)}', space=vmem, size = 0x1000, scoped, tag = 'scratch operand']
  #allocation3 [shape = 'f32[8,1]{1,0:T(8,128)}', space=vmem, size = 0x1000, scoped, tag = 'scratch operand']
  #allocation4 [shape = 'f32[8,32]{1,0:T(8,128)}', space=vmem, size = 0x1000, scoped, tag = 'scratch operand']
  %s0 = inlined_call_operand.hbm [shape: f32[2,8,32], index: 0, kind: input, shape index: {}]
  %s1 = inlined_call_operand.hbm [shape: f32[8,32], index: 1, kind: input, shape index: {}]
  %s2 = inlined_call_operand.hbm [shape: f32[32,32], index: 2, kind: input, shape index: {}]
  %s3 = inlined_call_operand.hbm [shape: f32[2,8,8], index: 3, kind: input, shape index: {}]
  %s4 = inlined_call_operand.hbm [shape: f32[2,8,32], index: 4, kind: output, shape index: {}]
  %s5 = sld [smem:[#allocation0]]
  $region73: #{tpu_custom_call.1} parent=0
    _
  %s7 = ssub.s32 1, %s5
  %s8 = scalar_select 0, %s7, %s5
  $region1: #{tpu_custom_call.1} parent=0
    #allocation5 [shape = 'u8[8192]{0}', space=vmem, size = 0x2000, scoped, tag = 'input window, operand 0']
    #allocation6 [shape = 's32[2]{0}', space=sflag, size = 0x8, scoped, tag = 'scoped memory for tpu_custom_call.1']
    #allocation7 [shape = 's32[2]{0}', space=sflag, size = 0x8, scoped, tag = 'scoped memory for tpu_custom_call.1']
    #allocation8 [shape = 'u8[4096]{0}', space=vmem, size = 0x1000, scoped, tag = 'input window, operand 1, single buffered']
    #allocation9 [shape = 's32[1]{0}', space=sflag, size = 0x4, scoped, tag = 'scoped memory for tpu_custom_call.1']
    #allocation10 [shape = 'u8[16384]{0}', space=vmem, size = 0x4000, scoped, tag = 'input window, operand 2, single buffered']
    #allocation11 [shape = 'u8[8192]{0}', space=vmem, size = 0x2000, scoped, tag = 'input window, operand 3']
    #allocation12 [shape = 's32[2]{0}', space=sflag, size = 0x8, scoped, tag = 'scoped memory for tpu_custom_call.1']
    #allocation13 [shape = 'u8[8192]{0}', space=vmem, size = 0x2000, scoped, tag = 'output window, operand 0']
    %9 = vsyncpa [#allocation6], 0
    %s10 = scalar_lea.sflag [#allocation6], 1
    %11 = vsyncpa %s10, 0
    %12 = vsyncpa [#allocation9], 0
    %13 = vsyncpa [#allocation12], 0
    %s14 = scalar_lea.sflag [#allocation12], 1
    %15 = vsyncpa %s14, 0
    %16 = vsyncpa [#allocation7], 0
    %s17 = scalar_lea.sflag [#allocation7], 1
    %18 = vsyncpa %s17, 0
    loop: start=0, step=1, limit=4
    $region2: #{tpu_custom_call.1} parent=1 // loop_pre_header
      _
    $region3: #{tpu_custom_call.1} parent=1 // loop_header
      %s20 = sphi 0, %s24
      %p21 = scmp.ge.s32.totalorder %s20, 4
      %s27 = sphi 0, %s39
      %s28 = sphi 0, %s35
      %s29 = sphi 0, %s27
      %s30 = sphi 0, %s28
      %s31 = sphi 0, %s29
      %s32 = sphi 0, %s30
      %s44 = sphi 0, %s46
      %s47 = sphi 0, %s44
      %s48 = sphi 0, %s47
      %s64 = sphi 0, %s48
      %s68 = sphi 0, %s68
      %s70 = sphi 0, %s68
      %s71 = sphi 0, %s70
      %s85 = sphi 0, %s71
      %s89 = sphi 0, %s89
      %s91 = sphi 0, %s89
      %s92 = sphi 0, %s91
      %s106 = sphi 0, %s92
      %s114 = sphi 0, %s116
      %s117 = sphi 0, %s114
      %s118 = sphi 0, %s117
      %s134 = sphi 0, %s118
      %s140 = sphi 0, %s142
      %s143 = sphi 0, %s140
      %s144 = sphi 0, %s143
      %s160 = sphi 0, %s144
    $region4: #{tpu_custom_call.1} parent=1 // loop_header_branch
      %23 = sbr.rel (%p21) target = $region8
    $region5: #{tpu_custom_call.1} parent=1 // loop_body
      %s25 = ssub.s32 %s20, 1
      %s26 = ssub.s32 %s20, 2
      %s33 = sadd.s32 1, %s28
      %p34 = scmp.ge.s32.totalorder %s33, 1
      %s35 = scalar_select %p34, 0, %s33
      %s36 = sadd.s32 1, %s27
      %s37 = scalar_select %p34, %s36, %s27
      %p38 = scmp.ge.s32.totalorder %s37, 2
      %s39 = scalar_select %p38, 0, %s37
      %s40 = ssub.s32 %s27, %s39
      %s41 = ssub.s32 %s28, %s35
      %s42 = sor.u32 %s40, %s41
      %p43 = scmp.eq.s32.totalorder %s42, 0
      %s45 = sadd.s32 %s44, 1
      %s46 = scalar_select %p43, %s44, %s45
      %p49 = pneg %p43
      %p50 = scmp.eq.s32.totalorder %s20, 1
      %p51 = por %p49, %p50
      %p52 = scmp.ne.s32.totalorder %s44, %s47
      %p53 = scmp.eq.s32.totalorder %s20, 0
      %p54 = por %p52, %p53
      %p55 = scmp.ne.s32.totalorder %s44, %s47
      %p56 = scmp.eq.s32.totalorder %s25, 1
      %p57 = por %p55, %p56
      %p58 = scmp.ne.s32.totalorder %s47, %s48
      %p59 = scmp.eq.s32.totalorder %s25, 0
      %p60 = por %p58, %p59
      %p61 = scmp.ne.s32.totalorder %s47, %s48
      %p62 = scmp.eq.s32.totalorder %s26, 1
      %p63 = por %p61, %p62
      %p65 = scmp.ne.s32.totalorder %s48, %s64
      %p66 = scmp.eq.s32.totalorder %s26, 0
      %p67 = por %p65, %p66
      %s69 = sadd.s32 %s68, 1
      %p72 = scmp.eq.s32.totalorder %s20, 1
      %p73 = scmp.ne.s32.totalorder %s68, %s70
      %p74 = scmp.eq.s32.totalorder %s20, 0
      %p75 = por %p73, %p74
      %p76 = scmp.ne.s32.totalorder %s68, %s70
      %p77 = scmp.eq.s32.totalorder %s25, 1
      %p78 = por %p76, %p77
      %p79 = scmp.ne.s32.totalorder %s70, %s71
      %p80 = scmp.eq.s32.totalorder %s25, 0
      %p81 = por %p79, %p80
      %p82 = scmp.ne.s32.totalorder %s70, %s71
      %p83 = scmp.eq.s32.totalorder %s26, 1
      %p84 = por %p82, %p83
      %p86 = scmp.ne.s32.totalorder %s71, %s85
      %p87 = scmp.eq.s32.totalorder %s26, 0
      %p88 = por %p86, %p87
      %s90 = sadd.s32 %s89, 1
      %p93 = scmp.eq.s32.totalorder %s20, 1
      %p94 = scmp.ne.s32.totalorder %s89, %s91
      %p95 = scmp.eq.s32.totalorder %s20, 0
      %p96 = por %p94, %p95
      %p97 = scmp.ne.s32.totalorder %s89, %s91
      %p98 = scmp.eq.s32.totalorder %s25, 1
      %p99 = por %p97, %p98
      %p100 = scmp.ne.s32.totalorder %s91, %s92
      %p101 = scmp.eq.s32.totalorder %s25, 0
      %p102 = por %p100, %p101
      %p103 = scmp.ne.s32.totalorder %s91, %s92
      %p104 = scmp.eq.s32.totalorder %s26, 1
      %p105 = por %p103, %p104
      %p107 = scmp.ne.s32.totalorder %s92, %s106
      %p108 = scmp.eq.s32.totalorder %s26, 0
      %p109 = por %p107, %p108
      %s110 = ssub.s32 %s27, %s39
      %s111 = ssub.s32 %s28, %s35
      %s112 = sor.u32 %s110, %s111
      %p113 = scmp.eq.s32.totalorder %s112, 0
      %s115 = sadd.s32 %s114, 1
      %s116 = scalar_select %p113, %s114, %s115
      %p119 = pneg %p113
      %p120 = scmp.eq.s32.totalorder %s20, 1
      %p121 = por %p119, %p120
      %p122 = scmp.ne.s32.totalorder %s114, %s117
      %p123 = scmp.eq.s32.totalorder %s20, 0
      %p124 = por %p122, %p123
      %p125 = scmp.ne.s32.totalorder %s114, %s117
      %p126 = scmp.eq.s32.totalorder %s25, 1
      %p127 = por %p125, %p126
      %p128 = scmp.ne.s32.totalorder %s117, %s118
      %p129 = scmp.eq.s32.totalorder %s25, 0
      %p130 = por %p128, %p129
      %p131 = scmp.ne.s32.totalorder %s117, %s118
      %p132 = scmp.eq.s32.totalorder %s26, 1
      %p133 = por %p131, %p132
      %p135 = scmp.ne.s32.totalorder %s118, %s134
      %p136 = scmp.eq.s32.totalorder %s26, 0
      %p137 = por %p135, %p136
      %s138 = ssub.s32 %s27, %s39
      %p139 = scmp.eq.s32.totalorder %s138, 0
      %s141 = sadd.s32 %s140, 1
      %s142 = scalar_select %p139, %s140, %s141
      %p145 = pneg %p139
      %p146 = scmp.eq.s32.totalorder %s20, 1
      %p147 = por %p145, %p146
      %p148 = scmp.ne.s32.totalorder %s140, %s143
      %p149 = scmp.eq.s32.totalorder %s20, 0
      %p150 = por %p148, %p149
      %p151 = scmp.ne.s32.totalorder %s140, %s143
      %p152 = scmp.eq.s32.totalorder %s25, 1
      %p153 = por %p151, %p152
      %p154 = scmp.ne.s32.totalorder %s143, %s144
      %p155 = scmp.eq.s32.totalorder %s25, 0
      %p156 = por %p154, %p155
      %p157 = scmp.ne.s32.totalorder %s143, %s144
      %p158 = scmp.eq.s32.totalorder %s26, 1
      %p159 = por %p157, %p158
      %p161 = scmp.ne.s32.totalorder %s144, %s160
      %p162 = scmp.eq.s32.totalorder %s26, 0
      %p163 = por %p161, %p162
      %p164 = scmp.le.s32.totalorder 1, %s20
      %p165 = scmp.lt.s32.totalorder %s20, 3
      %p166 = pnand %p164, %p165
      %p167 = pneg %p166
      // Predicated region
      $region9: #{tpu_custom_call.1} parent=5 // pred_check
        _
      $region10: #{tpu_custom_call.1} parent=5 // pred_check_branch
        %169 = sbr.rel (%p166) target = $region12
      $region11: #{tpu_custom_call.1} parent=5 // pred_region
        %s170 = ssub.s32 %s20, 1
        // Predicated region
        $region13: #{tpu_custom_call.1} parent=11 // pred_check
          %p171 = pneg %p81
        $region14: #{tpu_custom_call.1} parent=11 // pred_check_branch
          %173 = sbr.rel (%p171) target = $region16
        $region15: #{tpu_custom_call.1} parent=11 // pred_region
          %175 = vsyncadd [#allocation9], 0
          %s177 = sshll.u32 %s1, 4
          %s178 = int_to_ptr.hbm [resolvable:$true] %s177
          %s179 = sshll.u32 [#allocation8], 4
          %s180 = int_to_ptr.vmem [resolvable:$true] %s179
          %182 = dma.hbm_to_vmem [thread:$0]  %s178, 128, %s180, [#allocation9]
        $region16: #{tpu_custom_call.1} parent=11 // pred_fallthru
          _
        // Predicated region
        $region17: #{tpu_custom_call.1} parent=11 // pred_check
          %p183 = pneg %p102
        $region18: #{tpu_custom_call.1} parent=11 // pred_check_branch
          %185 = sbr.rel (%p183) target = $region20
        $region19: #{tpu_custom_call.1} parent=11 // pred_region
          %187 = vsyncadd [#allocation9], 0
          %s188 = sshll.u32 %s2, 4
          %s189 = int_to_ptr.hbm [resolvable:$true] %s188
          %s190 = sshll.u32 [#allocation10], 4
          %s191 = int_to_ptr.vmem [resolvable:$true] %s190
          %196 = dma.hbm_to_vmem [thread:$0]  %s189, 512, %s191, [#allocation9], 128, 128, 8
        $region20: #{tpu_custom_call.1} parent=11 // pred_fallthru
          _
      $region12: #{tpu_custom_call.1} parent=5 // pred_fallthru
        _
      %p197 = scmp.lt.s32.totalorder %s20, 2
      // Predicated region
      $region21: #{tpu_custom_call.1} parent=5 // pred_check
        %p198 = pneg %p197
      $region22: #{tpu_custom_call.1} parent=5 // pred_check_branch
        %200 = sbr.rel (%p198) target = $region24
      $region23: #{tpu_custom_call.1} parent=5 // pred_region
        // Predicated region
        $region25: #{tpu_custom_call.1} parent=23 // pred_check
          %p201 = pneg %p54
        $region26: #{tpu_custom_call.1} parent=23 // pred_check_branch
          %203 = sbr.rel (%p201) target = $region28
        $region27: #{tpu_custom_call.1} parent=23 // pred_region
          %s204 = sand.u32 %s44, 1
          %s205 = scalar_lea.sflag [#allocation6], %s204
          %s206 = sand.u32 %s44, 1
          %s207 = smul.addr %s206, 8
          %s208 = scalar_lea.vmem [#allocation5], %s207
          %210 = vsyncadd %s205, 0
          %s211 = sadd.s32 %s28, %s27
          %s212 = smul.addr %s211, 8
          %s213 = scalar_lea.hbm %s0, %s212
          %s215 = sshll.u32 %s213, 4
          %s216 = int_to_ptr.hbm [resolvable:$true] %s215
          %s217 = sshll.u32 %s208, 4
          %s218 = int_to_ptr.vmem [resolvable:$true] %s217
          %220 = dma.hbm_to_vmem [thread:$0]  %s216, 128, %s218, %s205
        $region28: #{tpu_custom_call.1} parent=23 // pred_fallthru
          _
        // Predicated region
        $region29: #{tpu_custom_call.1} parent=23 // pred_check
          %p221 = pneg %p124
        $region30: #{tpu_custom_call.1} parent=23 // pred_check_branch
          %223 = sbr.rel (%p221) target = $region32
        $region31: #{tpu_custom_call.1} parent=23 // pred_region
          %s224 = sand.u32 %s114, 1
          %s225 = scalar_lea.sflag [#allocation12], %s224
          %s226 = sand.u32 %s114, 1
          %s227 = smul.addr %s226, 8
          %s228 = scalar_lea.vmem [#allocation11], %s227
          %230 = vsyncadd %s225, 0
          %s231 = sadd.s32 %s28, %s27
          %s232 = smul.addr %s231, 8
          %s233 = scalar_lea.hbm %s3, %s232
          %s235 = sshll.u32 %s233, 4
          %s236 = int_to_ptr.hbm [resolvable:$true] %s235
          %s237 = sshll.u32 %s228, 4
          %s238 = int_to_ptr.vmem [resolvable:$true] %s237
          %240 = dma.hbm_to_vmem [thread:$0]  %s236, 128, %s238, %s225
        $region32: #{tpu_custom_call.1} parent=23 // pred_fallthru
          _
      $region24: #{tpu_custom_call.1} parent=5 // pred_fallthru
        _
      %p241 = scmp.le.s32.totalorder 1, %s20
      %p242 = scmp.lt.s32.totalorder %s20, 3
      %p243 = pnand %p241, %p242
      %p244 = pneg %p243
      // Predicated region
      $region33: #{tpu_custom_call.1} parent=5 // pred_check
        _
      $region34: #{tpu_custom_call.1} parent=5 // pred_check_branch
        %246 = sbr.rel (%p243) target = $region36
      $region35: #{tpu_custom_call.1} parent=5 // pred_region
        %s247 = ssub.s32 %s20, 1
        %s248 = sand.u32 %s47, 1
        %s249 = scalar_lea.sflag [#allocation6], %s248
        %s250 = sand.u32 %s47, 1
        %s251 = smul.addr %s250, 8
        %s252 = scalar_lea.vmem [#allocation5], %s251
        // Predicated region
        $region37: #{tpu_custom_call.1} parent=35 // pred_check
          %p253 = pneg %p60
        $region38: #{tpu_custom_call.1} parent=35 // pred_check_branch
          %255 = sbr.rel (%p253) target = $region40
        $region39: #{tpu_custom_call.1} parent=35 // pred_region
          %257 = dma.done %s249, 128
        $region40: #{tpu_custom_call.1} parent=35 // pred_fallthru
          _
        // Predicated region
        $region41: #{tpu_custom_call.1} parent=35 // pred_check
          %p258 = pneg %p81
        $region42: #{tpu_custom_call.1} parent=35 // pred_check_branch
          %260 = sbr.rel (%p258) target = $region44
        $region43: #{tpu_custom_call.1} parent=35 // pred_region
          %262 = dma.done [#allocation9], 128
        $region44: #{tpu_custom_call.1} parent=35 // pred_fallthru
          _
        // Predicated region
        $region45: #{tpu_custom_call.1} parent=35 // pred_check
          %p263 = pneg %p102
        $region46: #{tpu_custom_call.1} parent=35 // pred_check_branch
          %265 = sbr.rel (%p263) target = $region48
        $region47: #{tpu_custom_call.1} parent=35 // pred_region
          %267 = dma.done [#allocation9], 512
        $region48: #{tpu_custom_call.1} parent=35 // pred_fallthru
          _
        %s268 = sand.u32 %s117, 1
        %s269 = scalar_lea.sflag [#allocation12], %s268
        %s270 = sand.u32 %s117, 1
        %s271 = smul.addr %s270, 8
        %s272 = scalar_lea.vmem [#allocation11], %s271
        // Predicated region
        $region49: #{tpu_custom_call.1} parent=35 // pred_check
          %p273 = pneg %p130
        $region50: #{tpu_custom_call.1} parent=35 // pred_check_branch
          %275 = sbr.rel (%p273) target = $region52
        $region51: #{tpu_custom_call.1} parent=35 // pred_region
          %277 = dma.done %s269, 128
        $region52: #{tpu_custom_call.1} parent=35 // pred_fallthru
          _
        %s278 = sand.u32 %s47, 1
        %s279 = scalar_lea.sflag [#allocation6], %s278
        %s280 = sand.u32 %s47, 1
        %s281 = smul.addr %s280, 8
        %s282 = scalar_lea.vmem [#allocation5], %s281
        %p283 = pneg %p60
        %p284 = pneg %p57
        %p285 = pneg %p81
        %p286 = pneg %p78
        %p287 = pneg %p102
        %p288 = pneg %p99
        %s289 = sand.u32 %s117, 1
        %s290 = scalar_lea.sflag [#allocation12], %s289
        %s291 = sand.u32 %s117, 1
        %s292 = smul.addr %s291, 8
        %s293 = scalar_lea.vmem [#allocation11], %s292
        %p294 = pneg %p130
        %p295 = pneg %p127
        %p296 = pneg %p156
        %p297 = pneg %p153
        %s298 = sand.u32 %s143, 1
        %s299 = scalar_lea.sflag [#allocation7], %s298
        %s300 = sand.u32 %s143, 1
        %s301 = smul.addr %s300, 8
        %s302 = scalar_lea.vmem [#allocation13], %s301
        %p303 = scmp.eq.s32.totalorder %s30, 0
        // Predicated region
        $region53: #{tpu_custom_call.1} parent=35 // pred_check
          %p304 = pneg %p303
        $region54: #{tpu_custom_call.1} parent=35 // pred_check_branch
          %306 = sbr.rel (%p304) target = $region56
        $region55: #{tpu_custom_call.1} parent=35 // pred_region
          %vm307 = vcmask 7168
          %308 = vst.msk [vmem:[#allocation2] sm:$0xff] %vm307, -inf
          %309 = vst.msk [vmem:[#allocation3] sm:$0xff] %vm307, 0.0
          %vm310 = vcmask 261120
          %311 = vst.msk [vmem:[#allocation4] sm:$0xff] %vm310, 0.0
        $region56: #{tpu_custom_call.1} parent=35 // pred_fallthru
          _
        %v312 = vld [vmem:[%s252] sm:$0xff]
        %v313 = vld [vmem:[#allocation8] sm:$0xff]
        %v314 = vld [vmem:[%s272] sm:$0xff]
        %vm315 = vcmask 261120
        %v317 = vsel %vm315, %v313, 0
        %v320 = vsel %vm315, %v312, 0
        %322 = vmatpush.xpose.msra.mxu0 0.0
        %323 = vmatpush.xpose.msra.mxu0 0.0
        %324 = vmatpush.xpose.msra.mxu0 0.0
        %325 = vmatpush.xpose.msra.mxu0 0.0
        %326 = vmatpush.xpose.msra.mxu0 0.0
        %327 = vmatpush.xpose.msra.mxu0 0.0
        %328 = vmatpush.xpose.msra.mxu0 0.0
        %329 = vmatpush.xpose.msra.mxu0 0.0
        %330 = vmatpush.xpose.msra.mxu0 0.0
        %331 = vmatpush.xpose.msra.mxu0 0.0
        %332 = vmatpush.xpose.msra.mxu0 0.0
        %333 = vmatpush.xpose.msra.mxu0 0.0
        %334 = vmatpush.xpose.msra.mxu0 0.0
        %335 = vmatpush.xpose.msra.mxu0 0.0
        %336 = vmatpush.xpose.msra.mxu0 0.0
        %337 = vmatpush.xpose.msra.mxu0 %v320
        %338 = vmatmul.f32.gmra.mxu0 %v317
        %v339 = vpop.f32.mrf.mxu0
        %v340 = vadd.f32 %v314, %v339
        %341 = vdwg.mxu0
        %v342 = vld [vmem:[#allocation2] sm:$0xff]
        %vm343 = vcmask 64512
        %v344 = vsel %vm343, %v340, -inf
        %345 = vmax.xlane.f32.xlu0 %v344
        %v346 = vpop.xlane.xlu0 %345
        %v347 = vmax.f32 %v342, %v346
        %vm348 = vcmp.eq.f32.partialorder %v347, -inf
        %v349 = vsel %vm348, 0.0, %v347
        %v350 = vsub.f32 %v342, %v349
        %v351 = vmul.f32 %v350, 1.442695
        %v352 = vpow.pop %v351
        %354 = vset.pattern.permute.xlu0 0
        %355 = vperm.xlu0 %354, %v349
        %v356 = vpop.permute.xlu0 %355
        %v358 = vsub.f32 %v340, %v356
        %v359 = vmul.f32 %v358, 1.442695
        %v360 = vpow.pop %v359
        %v361 = vld [vmem:[#allocation3] sm:$0xff]
        %v362 = vmul.f32 %v352, %v361
        %v363 = vsel %vm343, %v360, 0.0
        %364 = vadd.xlane.f32.xlu0 %v363
        %v365 = vpop.xlane.xlu0 %364
        %v366 = vadd.f32 %v362, %v365
        %vm367 = vcmask 7168
        %368 = vst.msk [vmem:[#allocation3] sm:$0xff] %vm367, %v366
        %369 = vst.msk [vmem:[#allocation2] sm:$0xff] %vm367, %v347
        %v370 = vld [vmem:[#allocation4] sm:$0xff]
        %372 = vset.pattern.permute.xlu0 0
        %373 = vperm.xlu0 %372, %v352
        %v374 = vpop.permute.xlu0 %373
        %v376 = vmul.f32 %v374, %v370
        %v378 = vsel %vm343, %v360, 0
        %380 = vmatpush.msra.mxu0 0.0
        %381 = vmatpush.msra.mxu0 0.0
        %382 = vmatpush.msra.mxu0 0.0
        %383 = vmatpush.msra.mxu0 0.0
        %384 = vmatpush.msra.mxu0 0.0
        %385 = vmatpush.msra.mxu0 0.0
        %386 = vmatpush.msra.mxu0 0.0
        %387 = vmatpush.msra.mxu0 0.0
        %388 = vmatpush.msra.mxu0 0.0
        %389 = vmatpush.msra.mxu0 0.0
        %390 = vmatpush.msra.mxu0 0.0
        %391 = vmatpush.msra.mxu0 0.0
        %392 = vmatpush.msra.mxu0 0.0
        %393 = vmatpush.msra.mxu0 0.0
        %394 = vmatpush.msra.mxu0 0.0
        %395 = vmatpush.msra.mxu0 %v312
        %396 = vmatmul.f32.gmra.mxu0 %v378
        %v397 = vpop.f32.mrf.mxu0
        %v398 = vadd.f32 0.0, %v397
        %399 = vdwg.mxu0
        %v400 = vadd.f32 %v376, %v398
        %401 = vst.msk [vmem:[#allocation4] sm:$0xff] %vm315, %v400
        // Predicated region
        $region57: #{tpu_custom_call.1} parent=35 // pred_check
          %p402 = pneg %p303
        $region58: #{tpu_custom_call.1} parent=35 // pred_check_branch
          %404 = sbr.rel (%p402) target = $region60
        $region59: #{tpu_custom_call.1} parent=35 // pred_region
          %v405 = vld [vmem:[#allocation4] sm:$0xff]
          %v406 = vld [vmem:[#allocation3] sm:$0xff]
          %v407 = vrcp.pop %v406
          %v408 = vmul.f32 %v406, %v407
          %v409 = vsub.f32 1.0, %v408
          %v410 = vmul.f32 %v407, %v409
          %v411 = vadd.f32 %v407, %v410
          %vm412 = vweird.f32 %v406
          %vm413 = vweird.f32 %v407
          %vm414 = vmor %vm412, %vm413
          %v415 = vsel %vm414, %v407, %v411
          %v416 = vand.u32 2147483647, %v406
          %vm417 = vcmp.eq.f32.partialorder %v416, 8.507059e+37
          %v418 = vand.u32 %v406, 2147483648
          %v419 = vor.u32 1.1754944e-38, %v418
          %v420 = vsel %vm417, %v419, %v415
          %422 = vset.pattern.permute.xlu0 0
          %423 = vperm.xlu0 %422, %v420
          %v424 = vpop.permute.xlu0 %423
          %v426 = vmul.f32 %v405, %v424
          %v427 = vld [vmem:[#allocation10] sm:$0xff]
          %v428 = vld [vmem:[#allocation10 + $0x8] sm:$0xff]
          %v429 = vld [vmem:[#allocation10 + $0x10] sm:$0xff]
          %v430 = vld [vmem:[#allocation10 + $0x18] sm:$0xff]
          %v432 = vsel %vm315, %v426, 0
          %434 = vmatpush.msra.mxu0 0.0
          %435 = vmatpush.msra.mxu0 0.0
          %436 = vmatpush.msra.mxu0 0.0
          %437 = vmatpush.msra.mxu0 0.0
          %438 = vmatpush.msra.mxu0 0.0
          %439 = vmatpush.msra.mxu0 0.0
          %440 = vmatpush.msra.mxu0 0.0
          %441 = vmatpush.msra.mxu0 0.0
          %442 = vmatpush.msra.mxu0 0.0
          %443 = vmatpush.msra.mxu0 0.0
          %444 = vmatpush.msra.mxu0 0.0
          %445 = vmatpush.msra.mxu0 0.0
          %446 = vmatpush.msra.mxu0 %v430
          %447 = vmatpush.msra.mxu0 %v429
          %448 = vmatpush.msra.mxu0 %v428
          %449 = vmatpush.msra.mxu0 %v427
          %450 = vmatmul.f32.gmra.mxu0 %v432
          %v451 = vpop.f32.mrf.mxu0
          %v452 = vadd.f32 0.0, %v451
          %453 = vdwg.mxu0
          %454 = vst.msk [vmem:[%s302] sm:$0xff] %vm315, %v452
        $region60: #{tpu_custom_call.1} parent=35 // pred_fallthru
          _
        %s455 = sand.u32 %s143, 1
        %s456 = scalar_lea.sflag [#allocation7], %s455
        %s457 = sand.u32 %s143, 1
        %s458 = smul.addr %s457, 8
        %s459 = scalar_lea.vmem [#allocation13], %s458
        // Predicated region
        $region61: #{tpu_custom_call.1} parent=35 // pred_check
          %p460 = pneg %p153
        $region62: #{tpu_custom_call.1} parent=35 // pred_check_branch
          %462 = sbr.rel (%p460) target = $region64
        $region63: #{tpu_custom_call.1} parent=35 // pred_region
          %464 = vsyncadd %s456, 0
          %s465 = smul.addr %s29, 8
          %s466 = scalar_lea.hbm %s4, %s465
          %s468 = sshll.u32 %s459, 4
          %s469 = int_to_ptr.vmem [resolvable:$true] %s468
          %s470 = sshll.u32 %s466, 4
          %s471 = int_to_ptr.hbm [resolvable:$true] %s470
          %473 = dma.vmem_to_hbm [thread:$0]  %s469, 128, %s471, %s456
        $region64: #{tpu_custom_call.1} parent=35 // pred_fallthru
          _
      $region36: #{tpu_custom_call.1} parent=5 // pred_fallthru
        _
      %p474 = scmp.le.s32.totalorder 2, %s20
      // Predicated region
      $region65: #{tpu_custom_call.1} parent=5 // pred_check
        %p475 = pneg %p474
      $region66: #{tpu_custom_call.1} parent=5 // pred_check_branch
        %477 = sbr.rel (%p475) target = $region68
      $region67: #{tpu_custom_call.1} parent=5 // pred_region
        %s478 = ssub.s32 %s20, 2
        // Predicated region
        $region69: #{tpu_custom_call.1} parent=67 // pred_check
          %p479 = pneg %p159
        $region70: #{tpu_custom_call.1} parent=67 // pred_check_branch
          %481 = sbr.rel (%p479) target = $region72
        $region71: #{tpu_custom_call.1} parent=67 // pred_region
          %s482 = sand.u32 %s144, 1
          %s483 = scalar_lea.sflag [#allocation7], %s482
          %s484 = sand.u32 %s144, 1
          %s485 = smul.addr %s484, 8
          %s486 = scalar_lea.vmem [#allocation13], %s485
          %488 = dma.done %s483, 128
        $region72: #{tpu_custom_call.1} parent=67 // pred_fallthru
          _
      $region68: #{tpu_custom_call.1} parent=5 // pred_fallthru
        _
    $region6: #{tpu_custom_call.1} parent=1 // loop_footer
      %s24 = sadd.s32 1, %s20
    $region7: #{tpu_custom_call.1} parent=1 // loop_footer_branch
      %19 = sbr.rel target = $region3
    $region8: #{tpu_custom_call.1} parent=1 // loop_exit
      _
    %489 = vsyncpa [#allocation6], 1
    %s490 = scalar_lea.sflag [#allocation6], 1
    %491 = vsyncpa %s490, 1
    %492 = vsyncpa [#allocation9], 1
    %493 = vsyncpa [#allocation12], 1
    %s494 = scalar_lea.sflag [#allocation12], 1
    %495 = vsyncpa %s494, 1
    %496 = vsyncpa [#allocation7], 1
    %s497 = scalar_lea.sflag [#allocation7], 1
    %498 = vsyncpa %s497, 1

// kernel: tpu_custom_call.1
$region0: #{tpu_custom_call.1}
  #allocation0 [shape = 'u32[]', space=smem, size = 0x4, offset = 0x4, fixed_abs, tag = 'smem constant byte address 0x4 - core index']
  #allocation1 [shape = 'u32[72,128]{1,0:T(1,128)}', space=vmem, size = 0x9000, scoped, tag = 'internal scratch']
  #allocation2 [shape = 'f32[8,1]{1,0:T(8,128)}', space=vmem, size = 0x1000, scoped, tag = 'scratch operand']
  #allocation3 [shape = 'f32[8,1]{1,0:T(8,128)}', space=vmem, size = 0x1000, scoped, tag = 'scratch operand']
  #allocation4 [shape = 'f32[8,32]{1,0:T(8,128)}', space=vmem, size = 0x1000, scoped, tag = 'scratch operand']
  %s0 = inlined_call_operand.hbm [shape: f32[2,8,32], index: 0, kind: input, shape index: {}]
  %s1 = inlined_call_operand.hbm [shape: f32[8,32], index: 1, kind: input, shape index: {}]
  %s2 = inlined_call_operand.hbm [shape: f32[32,32], index: 2, kind: input, shape index: {}]
  %s3 = inlined_call_operand.hbm [shape: f32[2,8,8], index: 3, kind: input, shape index: {}]
  %s4 = inlined_call_operand.hbm [shape: f32[2,8,32], index: 4, kind: output, shape index: {}]
  %s5 = sld [smem:[#allocation0]]
  $region73: #{tpu_custom_call.1} parent=0
    _
  %s7 = ssub.s32 1, %s5
  %s8 = scalar_select 0, %s7, %s5
  $region1: #{tpu_custom_call.1} parent=0
    #allocation5 [shape = 'u8[8192]{0}', space=vmem, size = 0x2000, scoped, tag = 'input window, operand 0']
    #allocation6 [shape = 's32[2]{0}', space=sflag, size = 0x8, scoped, tag = 'scoped memory for tpu_custom_call.1']
    #allocation7 [shape = 's32[2]{0}', space=sflag, size = 0x8, scoped, tag = 'scoped memory for tpu_custom_call.1']
    #allocation8 [shape = 'u8[4096]{0}', space=vmem, size = 0x1000, scoped, tag = 'input window, operand 1, single buffered']
    #allocation9 [shape = 's32[1]{0}', space=sflag, size = 0x4, scoped, tag = 'scoped memory for tpu_custom_call.1']
    #allocation10 [shape = 'u8[16384]{0}', space=vmem, size = 0x4000, scoped, tag = 'input window, operand 2, single buffered']
    #allocation11 [shape = 'u8[8192]{0}', space=vmem, size = 0x2000, scoped, tag = 'input window, operand 3']
    #allocation12 [shape = 's32[2]{0}', space=sflag, size = 0x8, scoped, tag = 'scoped memory for tpu_custom_call.1']
    #allocation13 [shape = 'u8[8192]{0}', space=vmem, size = 0x2000, scoped, tag = 'output window, operand 0']
    %9 = vsyncpa [#allocation6], 0
    %s10 = scalar_lea.sflag [#allocation6], 1
    %11 = vsyncpa %s10, 0
    %12 = vsyncpa [#allocation9], 0
    %13 = vsyncpa [#allocation12], 0
    %s14 = scalar_lea.sflag [#allocation12], 1
    %15 = vsyncpa %s14, 0
    %16 = vsyncpa [#allocation7], 0
    %s17 = scalar_lea.sflag [#allocation7], 1
    %18 = vsyncpa %s17, 0
    loop: start=0, step=1, limit=4
    $region2: #{tpu_custom_call.1} parent=1 // loop_pre_header
      _
    $region3: #{tpu_custom_call.1} parent=1 // loop_header
      %s20 = sphi 0, %s24
      %p21 = scmp.ge.s32.totalorder %s20, 4
      %s27 = sphi 0, %s39
      %s28 = sphi 0, %s35
      %s29 = sphi 0, %s27
      %s30 = sphi 0, %s28
      %s31 = sphi 0, %s29
      %s32 = sphi 0, %s30
      %s44 = sphi 0, %s46
      %s47 = sphi 0, %s44
      %s48 = sphi 0, %s47
      %s64 = sphi 0, %s48
      %s68 = sphi 0, %s68
      %s70 = sphi 0, %s68
      %s71 = sphi 0, %s70
      %s85 = sphi 0, %s71
      %s89 = sphi 0, %s89
      %s91 = sphi 0, %s89
      %s92 = sphi 0, %s91
      %s106 = sphi 0, %s92
      %s114 = sphi 0, %s116
      %s117 = sphi 0, %s114
      %s118 = sphi 0, %s117
      %s134 = sphi 0, %s118
      %s140 = sphi 0, %s142
      %s143 = sphi 0, %s140
      %s144 = sphi 0, %s143
      %s160 = sphi 0, %s144
    $region4: #{tpu_custom_call.1} parent=1 // loop_header_branch
      %23 = sbr.rel (%p21) target = $region8
    $region5: #{tpu_custom_call.1} parent=1 // loop_body
      %s25 = ssub.s32 %s20, 1
      %s26 = ssub.s32 %s20, 2
      %s33 = sadd.s32 1, %s28
      %p34 = scmp.ge.s32.totalorder %s33, 1
      %s35 = scalar_select %p34, 0, %s33
      %s36 = sadd.s32 1, %s27
      %s37 = scalar_select %p34, %s36, %s27
      %p38 = scmp.ge.s32.totalorder %s37, 2
      %s39 = scalar_select %p38, 0, %s37
      %s40 = ssub.s32 %s27, %s39
      %s41 = ssub.s32 %s28, %s35
      %s42 = sor.u32 %s40, %s41
      %p43 = scmp.eq.s32.totalorder %s42, 0
      %s45 = sadd.s32 %s44, 1
      %s46 = scalar_select %p43, %s44, %s45
      %p49 = pneg %p43
      %p50 = scmp.eq.s32.totalorder %s20, 1
      %p51 = por %p49, %p50
      %p52 = scmp.ne.s32.totalorder %s44, %s47
      %p53 = scmp.eq.s32.totalorder %s20, 0
      %p54 = por %p52, %p53
      %p55 = scmp.ne.s32.totalorder %s44, %s47
      %p56 = scmp.eq.s32.totalorder %s25, 1
      %p57 = por %p55, %p56
      %p58 = scmp.ne.s32.totalorder %s47, %s48
      %p59 = scmp.eq.s32.totalorder %s25, 0
      %p60 = por %p58, %p59
      %p61 = scmp.ne.s32.totalorder %s47, %s48
      %p62 = scmp.eq.s32.totalorder %s26, 1
      %p63 = por %p61, %p62
      %p65 = scmp.ne.s32.totalorder %s48, %s64
      %p66 = scmp.eq.s32.totalorder %s26, 0
      %p67 = por %p65, %p66
      %s69 = sadd.s32 %s68, 1
      %p72 = scmp.eq.s32.totalorder %s20, 1
      %p73 = scmp.ne.s32.totalorder %s68, %s70
      %p74 = scmp.eq.s32.totalorder %s20, 0
      %p75 = por %p73, %p74
      %p76 = scmp.ne.s32.totalorder %s68, %s70
      %p77 = scmp.eq.s32.totalorder %s25, 1
      %p78 = por %p76, %p77
      %p79 = scmp.ne.s32.totalorder %s70, %s71
      %p80 = scmp.eq.s32.totalorder %s25, 0
      %p81 = por %p79, %p80
      %p82 = scmp.ne.s32.totalorder %s70, %s71
      %p83 = scmp.eq.s32.totalorder %s26, 1
      %p84 = por %p82, %p83
      %p86 = scmp.ne.s32.totalorder %s71, %s85
      %p87 = scmp.eq.s32.totalorder %s26, 0
      %p88 = por %p86, %p87
      %s90 = sadd.s32 %s89, 1
      %p93 = scmp.eq.s32.totalorder %s20, 1
      %p94 = scmp.ne.s32.totalorder %s89, %s91
      %p95 = scmp.eq.s32.totalorder %s20, 0
      %p96 = por %p94, %p95
      %p97 = scmp.ne.s32.totalorder %s89, %s91
      %p98 = scmp.eq.s32.totalorder %s25, 1
      %p99 = por %p97, %p98
      %p100 = scmp.ne.s32.totalorder %s91, %s92
      %p101 = scmp.eq.s32.totalorder %s25, 0
      %p102 = por %p100, %p101
      %p103 = scmp.ne.s32.totalorder %s91, %s92
      %p104 = scmp.eq.s32.totalorder %s26, 1
      %p105 = por %p103, %p104
      %p107 = scmp.ne.s32.totalorder %s92, %s106
      %p108 = scmp.eq.s32.totalorder %s26, 0
      %p109 = por %p107, %p108
      %s110 = ssub.s32 %s27, %s39
      %s111 = ssub.s32 %s28, %s35
      %s112 = sor.u32 %s110, %s111
      %p113 = scmp.eq.s32.totalorder %s112, 0
      %s115 = sadd.s32 %s114, 1
      %s116 = scalar_select %p113, %s114, %s115
      %p119 = pneg %p113
      %p120 = scmp.eq.s32.totalorder %s20, 1
      %p121 = por %p119, %p120
      %p122 = scmp.ne.s32.totalorder %s114, %s117
      %p123 = scmp.eq.s32.totalorder %s20, 0
      %p124 = por %p122, %p123
      %p125 = scmp.ne.s32.totalorder %s114, %s117
      %p126 = scmp.eq.s32.totalorder %s25, 1
      %p127 = por %p125, %p126
      %p128 = scmp.ne.s32.totalorder %s117, %s118
      %p129 = scmp.eq.s32.totalorder %s25, 0
      %p130 = por %p128, %p129
      %p131 = scmp.ne.s32.totalorder %s117, %s118
      %p132 = scmp.eq.s32.totalorder %s26, 1
      %p133 = por %p131, %p132
      %p135 = scmp.ne.s32.totalorder %s118, %s134
      %p136 = scmp.eq.s32.totalorder %s26, 0
      %p137 = por %p135, %p136
      %s138 = ssub.s32 %s27, %s39
      %p139 = scmp.eq.s32.totalorder %s138, 0
      %s141 = sadd.s32 %s140, 1
      %s142 = scalar_select %p139, %s140, %s141
      %p145 = pneg %p139
      %p146 = scmp.eq.s32.totalorder %s20, 1
      %p147 = por %p145, %p146
      %p148 = scmp.ne.s32.totalorder %s140, %s143
      %p149 = scmp.eq.s32.totalorder %s20, 0
      %p150 = por %p148, %p149
      %p151 = scmp.ne.s32.totalorder %s140, %s143
      %p152 = scmp.eq.s32.totalorder %s25, 1
      %p153 = por %p151, %p152
      %p154 = scmp.ne.s32.totalorder %s143, %s144
      %p155 = scmp.eq.s32.totalorder %s25, 0
      %p156 = por %p154, %p155
      %p157 = scmp.ne.s32.totalorder %s143, %s144
      %p158 = scmp.eq.s32.totalorder %s26, 1
      %p159 = por %p157, %p158
      %p161 = scmp.ne.s32.totalorder %s144, %s160
      %p162 = scmp.eq.s32.totalorder %s26, 0
      %p163 = por %p161, %p162
      %p164 = scmp.le.s32.totalorder 1, %s20
      %p165 = scmp.lt.s32.totalorder %s20, 3
      %p166 = pnand %p164, %p165
      %p167 = pneg %p166
      // Predicated region
      $region9: #{tpu_custom_call.1} parent=5 // pred_check
        _
      $region10: #{tpu_custom_call.1} parent=5 // pred_check_branch
        %169 = sbr.rel (%p166) target = $region12
      $region11: #{tpu_custom_call.1} parent=5 // pred_region
        %s170 = ssub.s32 %s20, 1
        // Predicated region
        $region13: #{tpu_custom_call.1} parent=11 // pred_check
          %p171 = pneg %p81
        $region14: #{tpu_custom_call.1} parent=11 // pred_check_branch
          %173 = sbr.rel (%p171) target = $region16
        $region15: #{tpu_custom_call.1} parent=11 // pred_region
          %175 = vsyncadd [#allocation9], 0
          %s177 = sshll.u32 %s1, 4
          %s178 = int_to_ptr.hbm [resolvable:$true] %s177
          %s179 = sshll.u32 [#allocation8], 4
          %s180 = int_to_ptr.vmem [resolvable:$true] %s179
          %182 = dma.hbm_to_vmem [thread:$0]  %s178, 128, %s180, [#allocation9]
        $region16: #{tpu_custom_call.1} parent=11 // pred_fallthru
          _
        // Predicated region
        $region17: #{tpu_custom_call.1} parent=11 // pred_check
          %p183 = pneg %p102
        $region18: #{tpu_custom_call.1} parent=11 // pred_check_branch
          %185 = sbr.rel (%p183) target = $region20
        $region19: #{tpu_custom_call.1} parent=11 // pred_region
          %187 = vsyncadd [#allocation9], 0
          %s188 = sshll.u32 %s2, 4
          %s189 = int_to_ptr.hbm [resolvable:$true] %s188
          %s190 = sshll.u32 [#allocation10], 4
          %s191 = int_to_ptr.vmem [resolvable:$true] %s190
          %196 = dma.hbm_to_vmem [thread:$0]  %s189, 512, %s191, [#allocation9], 128, 128, 8
        $region20: #{tpu_custom_call.1} parent=11 // pred_fallthru
          _
      $region12: #{tpu_custom_call.1} parent=5 // pred_fallthru
        _
      %p197 = scmp.lt.s32.totalorder %s20, 2
      // Predicated region
      $region21: #{tpu_custom_call.1} parent=5 // pred_check
        %p198 = pneg %p197
      $region22: #{tpu_custom_call.1} parent=5 // pred_check_branch
        %200 = sbr.rel (%p198) target = $region24
      $region23: #{tpu_custom_call.1} parent=5 // pred_region
        // Predicated region
        $region25: #{tpu_custom_call.1} parent=23 // pred_check
          %p201 = pneg %p54
        $region26: #{tpu_custom_call.1} parent=23 // pred_check_branch
          %203 = sbr.rel (%p201) target = $region28
        $region27: #{tpu_custom_call.1} parent=23 // pred_region
          %s204 = sand.u32 %s44, 1
          %s205 = scalar_lea.sflag [#allocation6], %s204
          %s206 = sand.u32 %s44, 1
          %s207 = smul.addr %s206, 8
          %s208 = scalar_lea.vmem [#allocation5], %s207
          %210 = vsyncadd %s205, 0
          %s211 = sadd.s32 %s28, %s27
          %s212 = smul.addr %s211, 8
          %s213 = scalar_lea.hbm %s0, %s212
          %s215 = sshll.u32 %s213, 4
          %s216 = int_to_ptr.hbm [resolvable:$true] %s215
          %s217 = sshll.u32 %s208, 4
          %s218 = int_to_ptr.vmem [resolvable:$true] %s217
          %220 = dma.hbm_to_vmem [thread:$0]  %s216, 128, %s218, %s205
        $region28: #{tpu_custom_call.1} parent=23 // pred_fallthru
          _
        // Predicated region
        $region29: #{tpu_custom_call.1} parent=23 // pred_check
          %p221 = pneg %p124
        $region30: #{tpu_custom_call.1} parent=23 // pred_check_branch
          %223 = sbr.rel (%p221) target = $region32
        $region31: #{tpu_custom_call.1} parent=23 // pred_region
          %s224 = sand.u32 %s114, 1
          %s225 = scalar_lea.sflag [#allocation12], %s224
          %s226 = sand.u32 %s114, 1
          %s227 = smul.addr %s226, 8
          %s228 = scalar_lea.vmem [#allocation11], %s227
          %230 = vsyncadd %s225, 0
          %s231 = sadd.s32 %s28, %s27
          %s232 = smul.addr %s231, 8
          %s233 = scalar_lea.hbm %s3, %s232
          %s235 = sshll.u32 %s233, 4
          %s236 = int_to_ptr.hbm [resolvable:$true] %s235
          %s237 = sshll.u32 %s228, 4
          %s238 = int_to_ptr.vmem [resolvable:$true] %s237
          %240 = dma.hbm_to_vmem [thread:$0]  %s236, 128, %s238, %s225
        $region32: #{tpu_custom_call.1} parent=23 // pred_fallthru
          _
      $region24: #{tpu_custom_call.1} parent=5 // pred_fallthru
        _
      %p241 = scmp.le.s32.totalorder 1, %s20
      %p242 = scmp.lt.s32.totalorder %s20, 3
      %p243 = pnand %p241, %p242
      %p244 = pneg %p243
      // Predicated region
      $region33: #{tpu_custom_call.1} parent=5 // pred_check
        _
      $region34: #{tpu_custom_call.1} parent=5 // pred_check_branch
        %246 = sbr.rel (%p243) target = $region36
      $region35: #{tpu_custom_call.1} parent=5 // pred_region
        %s247 = ssub.s32 %s20, 1
        %s248 = sand.u32 %s47, 1
        %s249 = scalar_lea.sflag [#allocation6], %s248
        %s250 = sand.u32 %s47, 1
        %s251 = smul.addr %s250, 8
        %s252 = scalar_lea.vmem [#allocation5], %s251
        // Predicated region
        $region37: #{tpu_custom_call.1} parent=35 // pred_check
          %p253 = pneg %p60
        $region38: #{tpu_custom_call.1} parent=35 // pred_check_branch
          %255 = sbr.rel (%p253) target = $region40
        $region39: #{tpu_custom_call.1} parent=35 // pred_region
          %257 = dma.done %s249, 128
        $region40: #{tpu_custom_call.1} parent=35 // pred_fallthru
          _
        // Predicated region
        $region41: #{tpu_custom_call.1} parent=35 // pred_check
          %p258 = pneg %p81
        $region42: #{tpu_custom_call.1} parent=35 // pred_check_branch
          %260 = sbr.rel (%p258) target = $region44
        $region43: #{tpu_custom_call.1} parent=35 // pred_region
          %262 = dma.done [#allocation9], 128
        $region44: #{tpu_custom_call.1} parent=35 // pred_fallthru
          _
        // Predicated region
        $region45: #{tpu_custom_call.1} parent=35 // pred_check
          %p263 = pneg %p102
        $region46: #{tpu_custom_call.1} parent=35 // pred_check_branch
          %265 = sbr.rel (%p263) target = $region48
        $region47: #{tpu_custom_call.1} parent=35 // pred_region
          %267 = dma.done [#allocation9], 512
        $region48: #{tpu_custom_call.1} parent=35 // pred_fallthru
          _
        %s268 = sand.u32 %s117, 1
        %s269 = scalar_lea.sflag [#allocation12], %s268
        %s270 = sand.u32 %s117, 1
        %s271 = smul.addr %s270, 8
        %s272 = scalar_lea.vmem [#allocation11], %s271
        // Predicated region
        $region49: #{tpu_custom_call.1} parent=35 // pred_check
          %p273 = pneg %p130
        $region50: #{tpu_custom_call.1} parent=35 // pred_check_branch
          %275 = sbr.rel (%p273) target = $region52
        $region51: #{tpu_custom_call.1} parent=35 // pred_region
          %277 = dma.done %s269, 128
        $region52: #{tpu_custom_call.1} parent=35 // pred_fallthru
          _
        %s278 = sand.u32 %s47, 1
        %s279 = scalar_lea.sflag [#allocation6], %s278
        %s280 = sand.u32 %s47, 1
        %s281 = smul.addr %s280, 8
        %s282 = scalar_lea.vmem [#allocation5], %s281
        %p283 = pneg %p60
        %p284 = pneg %p57
        %p285 = pneg %p81
        %p286 = pneg %p78
        %p287 = pneg %p102
        %p288 = pneg %p99
        %s289 = sand.u32 %s117, 1
        %s290 = scalar_lea.sflag [#allocation12], %s289
        %s291 = sand.u32 %s117, 1
        %s292 = smul.addr %s291, 8
        %s293 = scalar_lea.vmem [#allocation11], %s292
        %p294 = pneg %p130
        %p295 = pneg %p127
        %p296 = pneg %p156
        %p297 = pneg %p153
        %s298 = sand.u32 %s143, 1
        %s299 = scalar_lea.sflag [#allocation7], %s298
        %s300 = sand.u32 %s143, 1
        %s301 = smul.addr %s300, 8
        %s302 = scalar_lea.vmem [#allocation13], %s301
        %p303 = scmp.eq.s32.totalorder %s30, 0
        // Predicated region
        $region53: #{tpu_custom_call.1} parent=35 // pred_check
          %p304 = pneg %p303
        $region54: #{tpu_custom_call.1} parent=35 // pred_check_branch
          %306 = sbr.rel (%p304) target = $region56
        $region55: #{tpu_custom_call.1} parent=35 // pred_region
          %vm307 = vcmask 7168
          %308 = vst.msk [vmem:[#allocation2] sm:$0xff] %vm307, -inf
          %309 = vst.msk [vmem:[#allocation3] sm:$0xff] %vm307, 0.0
          %vm310 = vcmask 261120
          %311 = vst.msk [vmem:[#allocation4] sm:$0xff] %vm310, 0.0
        $region56: #{tpu_custom_call.1} parent=35 // pred_fallthru
          _
        %v312 = vld [vmem:[%s252] sm:$0xff]
        %v313 = vld [vmem:[#allocation8] sm:$0xff]
        %v314 = vld [vmem:[%s272] sm:$0xff]
        %vm315 = vcmask 261120
        %v317 = vsel %vm315, %v313, 0
        %v320 = vsel %vm315, %v312, 0
        %322 = vmatpush.xpose.msra.mxu0 0.0
        %323 = vmatpush.xpose.msra.mxu0 0.0
        %324 = vmatpush.xpose.msra.mxu0 0.0
        %325 = vmatpush.xpose.msra.mxu0 0.0
        %326 = vmatpush.xpose.msra.mxu0 0.0
        %327 = vmatpush.xpose.msra.mxu0 0.0
        %328 = vmatpush.xpose.msra.mxu0 0.0
        %329 = vmatpush.xpose.msra.mxu0 0.0
        %330 = vmatpush.xpose.msra.mxu0 0.0
        %331 = vmatpush.xpose.msra.mxu0 0.0
        %332 = vmatpush.xpose.msra.mxu0 0.0
        %333 = vmatpush.xpose.msra.mxu0 0.0
        %334 = vmatpush.xpose.msra.mxu0 0.0
        %335 = vmatpush.xpose.msra.mxu0 0.0
        %336 = vmatpush.xpose.msra.mxu0 0.0
        %337 = vmatpush.xpose.msra.mxu0 %v320
        %338 = vmatmul.f32.gmra.mxu0 %v317
        %v339 = vpop.f32.mrf.mxu0
        %v340 = vadd.f32 %v314, %v339
        %341 = vdwg.mxu0
        %v342 = vld [vmem:[#allocation2] sm:$0xff]
        %vm343 = vcmask 64512
        %v344 = vsel %vm343, %v340, -inf
        %345 = vmax.xlane.f32.xlu0 %v344
        %v346 = vpop.xlane.xlu0 %345
        %v347 = vmax.f32 %v342, %v346
        %vm348 = vcmp.eq.f32.partialorder %v347, -inf
        %v349 = vsel %vm348, 0.0, %v347
        %v350 = vsub.f32 %v342, %v349
        %v351 = vmul.f32 %v350, 1.442695
        %v352 = vpow.pop %v351
        %354 = vset.pattern.permute.xlu0 0
        %355 = vperm.xlu0 %354, %v349
        %v356 = vpop.permute.xlu0 %355
        %v358 = vsub.f32 %v340, %v356
        %v359 = vmul.f32 %v358, 1.442695
        %v360 = vpow.pop %v359
        %v361 = vld [vmem:[#allocation3] sm:$0xff]
        %v362 = vmul.f32 %v352, %v361
        %v363 = vsel %vm343, %v360, 0.0
        %364 = vadd.xlane.f32.xlu0 %v363
        %v365 = vpop.xlane.xlu0 %364
        %v366 = vadd.f32 %v362, %v365
        %vm367 = vcmask 7168
        %368 = vst.msk [vmem:[#allocation3] sm:$0xff] %vm367, %v366
        %369 = vst.msk [vmem:[#allocation2] sm:$0xff] %vm367, %v347
        %v370 = vld [vmem:[#allocation4] sm:$0xff]
        %372 = vset.pattern.permute.xlu0 0
        %373 = vperm.xlu0 %372, %v352
        %v374 = vpop.permute.xlu0 %373
        %v376 = vmul.f32 %v374, %v370
        %v378 = vsel %vm343, %v360, 0
        %380 = vmatpush.msra.mxu0 0.0
        %381 = vmatpush.msra.mxu0 0.0
        %382 = vmatpush.msra.mxu0 0.0
        %383 = vmatpush.msra.mxu0 0.0
        %384 = vmatpush.msra.mxu0 0.0
        %385 = vmatpush.msra.mxu0 0.0
        %386 = vmatpush.msra.mxu0 0.0
        %387 = vmatpush.msra.mxu0 0.0
        %388 = vmatpush.msra.mxu0 0.0
        %389 = vmatpush.msra.mxu0 0.0
        %390 = vmatpush.msra.mxu0 0.0
        %391 = vmatpush.msra.mxu0 0.0
        %392 = vmatpush.msra.mxu0 0.0
        %393 = vmatpush.msra.mxu0 0.0
        %394 = vmatpush.msra.mxu0 0.0
        %395 = vmatpush.msra.mxu0 %v312
        %396 = vmatmul.f32.gmra.mxu0 %v378
        %v397 = vpop.f32.mrf.mxu0
        %v398 = vadd.f32 0.0, %v397
        %399 = vdwg.mxu0
        %v400 = vadd.f32 %v376, %v398
        %401 = vst.msk [vmem:[#allocation4] sm:$0xff] %vm315, %v400
        // Predicated region
        $region57: #{tpu_custom_call.1} parent=35 // pred_check
          %p402 = pneg %p303
        $region58: #{tpu_custom_call.1} parent=35 // pred_check_branch
          %404 = sbr.rel (%p402) target = $region60
        $region59: #{tpu_custom_call.1} parent=35 // pred_region
          %v405 = vld [vmem:[#allocation4] sm:$0xff]
          %v406 = vld [vmem:[#allocation3] sm:$0xff]
          %v407 = vrcp.pop %v406
          %v408 = vmul.f32 %v406, %v407
          %v409 = vsub.f32 1.0, %v408
          %v410 = vmul.f32 %v407, %v409
          %v411 = vadd.f32 %v407, %v410
          %vm412 = vweird.f32 %v406
          %vm413 = vweird.f32 %v407
          %vm414 = vmor %vm412, %vm413
          %v415 = vsel %vm414, %v407, %v411
          %v416 = vand.u32 2147483647, %v406
          %vm417 = vcmp.eq.f32.partialorder %v416, 8.507059e+37
          %v418 = vand.u32 %v406, 2147483648
          %v419 = vor.u32 1.1754944e-38, %v418
          %v420 = vsel %vm417, %v419, %v415
          %422 = vset.pattern.permute.xlu0 0
          %423 = vperm.xlu0 %422, %v420
          %v424 = vpop.permute.xlu0 %423
          %v426 = vmul.f32 %v405, %v424
          %v427 = vld [vmem:[#allocation10] sm:$0xff]
          %v428 = vld [vmem:[#allocation10 + $0x8] sm:$0xff]
          %v429 = vld [vmem:[#allocation10 + $0x10] sm:$0xff]
          %v430 = vld [vmem:[#allocation10 + $0x18] sm:$0xff]
          %v432 = vsel %vm315, %v426, 0
          %434 = vmatpush.msra.mxu0 0.0
          %435 = vmatpush.msra.mxu0 0.0
          %436 = vmatpush.msra.mxu0 0.0
          %437 = vmatpush.msra.mxu0 0.0
          %438 = vmatpush.msra.mxu0 0.0
          %439 = vmatpush.msra.mxu0 0.0
          %440 = vmatpush.msra.mxu0 0.0
          %441 = vmatpush.msra.mxu0 0.0
          %442 = vmatpush.msra.mxu0 0.0
          %443 = vmatpush.msra.mxu0 0.0
          %444 = vmatpush.msra.mxu0 0.0
          %445 = vmatpush.msra.mxu0 0.0
          %446 = vmatpush.msra.mxu0 %v430
          %447 = vmatpush.msra.mxu0 %v429
          %448 = vmatpush.msra.mxu0 %v428
          %449 = vmatpush.msra.mxu0 %v427
          %450 = vmatmul.f32.gmra.mxu0 %v432
          %v451 = vpop.f32.mrf.mxu0
          %v452 = vadd.f32 0.0, %v451
          %453 = vdwg.mxu0
          %454 = vst.msk [vmem:[%s302] sm:$0xff] %vm315, %v452
        $region60: #{tpu_custom_call.1} parent=35 // pred_fallthru
          _
        %s455 = sand.u32 %s143, 1
        %s456 = scalar_lea.sflag [#allocation7], %s455
        %s457 = sand.u32 %s143, 1
        %s458 = smul.addr %s457, 8
        %s459 = scalar_lea.vmem [#allocation13], %s458
        // Predicated region
        $region61: #{tpu_custom_call.1} parent=35 // pred_check
          %p460 = pneg %p153
        $region62: #{tpu_custom_call.1} parent=35 // pred_check_branch
          %462 = sbr.rel (%p460) target = $region64
        $region63: #{tpu_custom_call.1} parent=35 // pred_region
          %464 = vsyncadd %s456, 0
          %s465 = smul.addr %s29, 8
          %s466 = scalar_lea.hbm %s4, %s465
          %s468 = sshll.u32 %s459, 4
          %s469 = int_to_ptr.vmem [resolvable:$true] %s468
          %s470 = sshll.u32 %s466, 4
          %s471 = int_to_ptr.hbm [resolvable:$true] %s470
          %473 = dma.vmem_to_hbm [thread:$0]  %s469, 128, %s471, %s456
        $region64: #{tpu_custom_call.1} parent=35 // pred_fallthru
          _
      $region36: #{tpu_custom_call.1} parent=5 // pred_fallthru
        _
      %p474 = scmp.le.s32.totalorder 2, %s20
      // Predicated region
      $region65: #{tpu_custom_call.1} parent=5 // pred_check
        %p475 = pneg %p474
      $region66: #{tpu_custom_call.1} parent=5 // pred_check_branch
        %477 = sbr.rel (%p475) target = $region68
      $region67: #{tpu_custom_call.1} parent=5 // pred_region
        %s478 = ssub.s32 %s20, 2
        // Predicated region
        $region69: #{tpu_custom_call.1} parent=67 // pred_check
          %p479 = pneg %p159
        $region70: #{tpu_custom_call.1} parent=67 // pred_check_branch
          %481 = sbr.rel (%p479) target = $region72
        $region71: #{tpu_custom_call.1} parent=67 // pred_region
          %s482 = sand.u32 %s144, 1
          %s483 = scalar_lea.sflag [#allocation7], %s482
          %s484 = sand.u32 %s144, 1
          %s485 = smul.addr %s484, 8
          %s486 = scalar_lea.vmem [#allocation13], %s485
          %488 = dma.done %s483, 128
        $region72: #{tpu_custom_call.1} parent=67 // pred_fallthru
          _
      $region68: #{tpu_custom_call.1} parent=5 // pred_fallthru
        _
    $region6: #{tpu_custom_call.1} parent=1 // loop_footer
      %s24 = sadd.s32 1, %s20
    $region7: #{tpu_custom_call.1} parent=1 // loop_footer_branch
      %19 = sbr.rel target = $region3
    $region8: #{tpu_custom_call.1} parent=1 // loop_exit
      _
    %489 = vsyncpa [#allocation6], 1
    %s490 = scalar_lea.sflag [#allocation6], 1
    %491 = vsyncpa %s490, 1
    %492 = vsyncpa [#allocation9], 1
    %493 = vsyncpa [#allocation12], 1
    %s494 = scalar_lea.sflag [#allocation12], 1
    %495 = vsyncpa %s494, 1
    %496 = vsyncpa [#allocation7], 1
    %s497 = scalar_lea.sflag [#allocation7], 1
    %498 = vsyncpa %s497, 1

</llo_original>
